<compile_context>
chip_gen: v7x
topology: tpu7x:2x2x1
jax: 0.10.0
libtpu: 0.0.40
codegen_flags: <defaults>
</compile_context>

<pallas_src>
import jax
import jax.numpy as jnp
from jax.experimental import pallas as pl
from jax.experimental.pallas import tpu as pltpu


LANE = 128   # FC hidden / class padding (lane-dense final store)
C1P = 8      # conv1 output-channel padding (6 real channels)
C2P = 16     # conv2 output channels (16 real channels -> zero padding waste)


# ----------------------------------------------------------------------------
# Pallas kernels
# ----------------------------------------------------------------------------
def _conv_relu_pool_kernel(p_ref, w_ref, b_ref, o_ref):
    """Fused conv (as matmul) + bias + ReLU + 2x2/stride-2 max-pool.

    p_ref: (1, 4, PH*PW, K)  im2col patches, grouped by pool-window offset
    w_ref: (K, C)            weights (zero rows meet zero-padded input lanes)
    b_ref: (1, C)            bias (zero in padded lanes)
    o_ref: (1, PH*PW, C)     pooled, ReLU'd output
    """
    w = w_ref[...]
    b = b_ref[...]
    out = None
    for j in range(4):  # static unroll over the 4 pool-window offsets
        acc = jnp.dot(p_ref[0, j], w, preferred_element_type=jnp.float32)
        acc = jnp.maximum(acc + b, 0.0)                       # bias + ReLU
        out = acc if out is None else jnp.maximum(out, acc)   # 2x2 max-pool
    o_ref[0] = out.astype(o_ref.dtype)


def _fc_fused_kernel(x_ref, w1_ref, b1_ref, w2_ref, b2_ref, w3_ref, b3_ref,
                     o_ref):
    """fc1 -> ReLU -> fc2 -> ReLU -> fc3 -> softmax (hidden dims padded to 128)."""
    h = jnp.dot(x_ref[...], w1_ref[...], preferred_element_type=jnp.float32)
    h = jnp.maximum(h + b1_ref[...], 0.0)
    h = jnp.dot(h, w2_ref[...], preferred_element_type=jnp.float32)
    h = jnp.maximum(h + b2_ref[...], 0.0)
    z = jnp.dot(h, w3_ref[...], preferred_element_type=jnp.float32)
    z = z + b3_ref[...]                     # padded class lanes carry -1e30
    m = jnp.max(z, axis=-1, keepdims=True)
    e = jnp.exp(z - m)                      # padded lanes underflow to 0
    denom = jnp.sum(e, axis=-1, keepdims=True)
    o_ref[...] = (e * pl.reciprocal(denom, approx=True)).astype(o_ref.dtype)


_VMEM = pl.BlockSpec(memory_space=pltpu.MemorySpace.VMEM)


# ----------------------------------------------------------------------------
# pallas_call wrappers
# ----------------------------------------------------------------------------
def _conv_relu_pool(patches4, w, b):
    """patches4: (B, 4, PH*PW, K) -> (B, PH*PW, C)."""
    B, _, PHW, K = patches4.shape
    C = w.shape[1]
    return pl.pallas_call(
        _conv_relu_pool_kernel,
        out_shape=jax.ShapeDtypeStruct((B, PHW, C), jnp.float32),
        grid=(B,),
        in_specs=[
            pl.BlockSpec((1, 4, PHW, K), lambda i: (i, 0, 0, 0)),
            pl.BlockSpec((K, C), lambda i: (0, 0)),
            pl.BlockSpec((1, C), lambda i: (0, 0)),
        ],
        out_specs=pl.BlockSpec((1, PHW, C), lambda i: (i, 0, 0)),
        compiler_params=pltpu.CompilerParams(
            dimension_semantics=("parallel",)),
    )(patches4, w, b)


def _fc_softmax(x, pp):
    """x: (B, 25*C2P) -> (B, 128) softmax probs (first 100 lanes are real)."""
    B = x.shape[0]
    return pl.pallas_call(
        _fc_fused_kernel,
        out_shape=jax.ShapeDtypeStruct((B, LANE), jnp.float32),
        in_specs=[_VMEM] * 7,
        out_specs=_VMEM,
    )(x, pp["fc1_w"], pp["fc1_b"], pp["fc2_w"], pp["fc2_b"],
      pp["fc3_w"], pp["fc3_b"])


# ----------------------------------------------------------------------------
# Glue: im2col patch extraction in NHWC, pre-grouped by pool offset
# ----------------------------------------------------------------------------
def _im2col_pool_groups(x_nhwc, k=5):
    """Valid 5x5 conv patches (column order kh, kw, c — matching the prepared
    weight layout), grouped by the 4 offsets of the following 2x2 max-pool.
    Returns (B, 4, PH*PW, k*k*C).  Cheap XLA slices/concat; the fused conv
    kernel consumes them directly."""
    B, H, W, C = x_nhwc.shape
    OH, OW = H - k + 1, W - k + 1
    PH, PW = OH // 2, OW // 2
    cols = []
    for kh in range(k):
        for kw in range(k):
            cols.append(x_nhwc[:, kh:kh + OH, kw:kw + OW, :])
    patches = jnp.concatenate(cols, axis=-1)          # (B, OH, OW, k*k*C)
    groups = []
    for dy in range(2):
        for dx in range(2):
            g = patches[:, dy:dy + 2 * PH:2, dx:dx + 2 * PW:2, :]
            groups.append(g.reshape(B, PH * PW, k * k * C))
    return jnp.stack(groups, axis=1)                  # (B, 4, PH*PW, k*k*C)


# ----------------------------------------------------------------------------
# Parameters: PyTorch-layout init + one-time repack into padded kernel layouts
# ----------------------------------------------------------------------------
def init_params(key):
    """PyTorch-layout parameters with PyTorch-default uniform(+-1/sqrt(fan_in))."""
    ks = jax.random.split(key, 10)

    def u(k, shape, fan_in):
        bound = 1.0 / jnp.sqrt(float(fan_in))
        return jax.random.uniform(k, shape, jnp.float32, -bound, bound)

    return {
        "conv1_w": u(ks[0], (6, 3, 5, 5), 3 * 5 * 5),
        "conv1_b": u(ks[1], (6,), 3 * 5 * 5),
        "conv2_w": u(ks[2], (16, 6, 5, 5), 6 * 5 * 5),
        "conv2_b": u(ks[3], (16,), 6 * 5 * 5),
        "fc1_w": u(ks[4], (120, 400), 400),
        "fc1_b": u(ks[5], (120,), 400),
        "fc2_w": u(ks[6], (84, 120), 120),
        "fc2_b": u(ks[7], (84,), 120),
        "fc3_w": u(ks[8], (100, 84), 84),
        "fc3_b": u(ks[9], (100,), 84),
    }


def prepare_params(p):
    """Repack PyTorch-layout params into the padded kernel layouts.
    Padded output lanes are zero (or -1e30 for the final logits) and padded
    contraction rows are zero, so numerics are unchanged."""
    f32 = jnp.float32

    # conv1: (OC=6, C=3, 5, 5) -> (kh, kw, c, oc_pad) -> (75, C1P)
    w1 = jnp.zeros((5, 5, 3, C1P), f32).at[:, :, :, :6].set(
        p["conv1_w"].transpose(2, 3, 1, 0)).reshape(75, C1P)
    b1 = jnp.zeros((1, C1P), f32).at[0, :6].set(p["conv1_b"])

    # conv2: its input lives in the C1P-padded channel layout -> K = 25*C1P
    w2 = jnp.zeros((5, 5, C1P, C2P), f32).at[:, :, :6, :16].set(
        p["conv2_w"].transpose(2, 3, 1, 0)).reshape(5 * 5 * C1P, C2P)
    b2 = jnp.zeros((1, C2P), f32).at[0, :16].set(p["conv2_b"])

    # fc1: PyTorch flatten order is (c, h, w); our features are (h, w, c=C2P).
    f1 = p["fc1_w"].reshape(120, 16, 5, 5).transpose(2, 3, 1, 0)  # (h,w,c,out)
    wf1 = jnp.zeros((5, 5, C2P, LANE), f32).at[:, :, :16, :120].set(
        f1).reshape(5 * 5 * C2P, LANE)
    bf1 = jnp.zeros((1, LANE), f32).at[0, :120].set(p["fc1_b"])

    wf2 = jnp.zeros((LANE, LANE), f32).at[:120, :84].set(p["fc2_w"].T)
    bf2 = jnp.zeros((1, LANE), f32).at[0, :84].set(p["fc2_b"])

    wf3 = jnp.zeros((LANE, LANE), f32).at[:84, :100].set(p["fc3_w"].T)
    # padded class logits get a huge negative bias -> exp() underflows to 0,
    # so the softmax over 128 lanes equals the softmax over the 100 real ones.
    bf3 = jnp.full((1, LANE), -1e30, f32).at[0, :100].set(p["fc3_b"])

    return {"conv1_w": w1, "conv1_b": b1, "conv2_w": w2, "conv2_b": b2,
            "fc1_w": wf1, "fc1_b": bf1, "fc2_w": wf2, "fc2_b": bf2,
            "fc3_w": wf3, "fc3_b": bf3}


# ----------------------------------------------------------------------------
# Full forward pass (matches LeNet100.forward)
# ----------------------------------------------------------------------------
@jax.jit
def lenet100_forward(pp, x):
    """x: (B, 3, 32, 32) NCHW float32 -> (B, 100) softmax probabilities."""
    B = x.shape[0]
    x = jnp.transpose(x, (0, 2, 3, 1))                      # NCHW -> NHWC, once
    p1 = _im2col_pool_groups(x)                             # (B, 4, 196, 75)
    h1 = _conv_relu_pool(p1, pp["conv1_w"], pp["conv1_b"])  # (B, 196, C1P)
    h1 = h1.reshape(B, 14, 14, C1P)
    p2 = _im2col_pool_groups(h1)                            # (B, 4, 25, 25*C1P)
    h2 = _conv_relu_pool(p2, pp["conv2_w"], pp["conv2_b"])  # (B, 25, C2P)
    feats = h2.reshape(B, 25 * C2P)                         # (B, 400)
    probs = _fc_softmax(feats, pp)                          # (B, 128)
    return probs[:, :100]


# ----------------------------------------------------------------------------
# Pure-JAX reference of the PyTorch module (for a self-check)
# ----------------------------------------------------------------------------
def _reference_forward(params, x):
    def conv(h, w, b):
        y = jax.lax.conv_general_dilated(
            h, w, window_strides=(1, 1), padding="VALID",
            dimension_numbers=("NCHW", "OIHW", "NCHW"))
        return jax.nn.relu(y + b[None, :, None, None])

    def pool(h):
        return jnp.maximum(
            jnp.maximum(h[:, :, 0::2, 0::2], h[:, :, 0::2, 1::2]),
            jnp.maximum(h[:, :, 1::2, 0::2], h[:, :, 1::2, 1::2]))

    h = pool(conv(x, params["conv1_w"], params["conv1_b"]))
    h = pool(conv(h, params["conv2_w"], params["conv2_b"]))
    h = h.reshape(h.shape[0], -1)
    h = jax.nn.relu(h @ params["fc1_w"].T + params["fc1_b"])
    h = jax.nn.relu(h @ params["fc2_w"].T + params["fc2_b"])
    return jax.nn.softmax(h @ params["fc3_w"].T + params["fc3_b"], axis=-1)


if __name__ == "__main__":
    key = jax.random.PRNGKey(0)
    k_param, k_x = jax.random.split(key)
    params = init_params(k_param)
    prepared = prepare_params(params)           # one-time repack / padding

    # LeNet100 needs 32x32 spatial input so the 16*5*5 flatten is valid.
    x = jax.random.normal(k_x, (2, 3, 32, 32), jnp.float32)

    out = lenet100_forward(prepared, x)
    out = jax.block_until_ready(out)

    assert out.shape == (2, 100)
    # softmax rows sum to ~1 (approx reciprocal -> slightly loose tolerance)
    assert bool(jnp.allclose(jnp.sum(out, axis=1), 1.0, atol=2e-3))
    # matches a pure-JAX reference of the PyTorch module
    ref = _reference_forward(params, x)
    assert bool(jnp.allclose(out, ref, atol=5e-3)), "mismatch vs reference"
    print("KERNEL_OK")
</pallas_src>

<mosaic_0001>
module attributes {stable_mosaic.version = 11 : i64} {
  func.func @_conv_relu_pool_kernel(%arg0: i32, %arg1: memref<1x4x196x75xf32, #tpu.memory_space<vmem>>, %arg2: memref<75x8xf32, #tpu.memory_space<vmem>>, %arg3: memref<1x8xf32, #tpu.memory_space<vmem>>, %arg4: memref<1x196x8xf32, #tpu.memory_space<vmem>>) attributes {dimension_semantics = [#tpu.dimension_semantics<parallel>], iteration_bounds = array<i64: 2>, scalar_prefetch = 0 : i64, scratch_operands = 0 : i64, tpu.core_type = #tpu.core_type<tc>, window_params = [{transform_indices = @transform_0, window_bounds = array<i64: 1, 4, 196, 75>}, {pipeline_mode = #tpu.pipeline_mode<synchronous>, transform_indices = @transform_1, window_bounds = array<i64: 75, 8>}, {pipeline_mode = #tpu.pipeline_mode<synchronous>, transform_indices = @transform_2, window_bounds = array<i64: 1, 8>}, {transform_indices = @transform_3, window_bounds = array<i64: 1, 196, 8>}]} {
    %c0 = arith.constant 0 : index
    %c0_0 = arith.constant 0 : index
    %0 = vector.load %arg2[%c0, %c0_0] : memref<75x8xf32, #tpu.memory_space<vmem>>, vector<75x8xf32>
    %c0_1 = arith.constant 0 : index
    %c0_2 = arith.constant 0 : index
    %1 = vector.load %arg3[%c0_1, %c0_2] : memref<1x8xf32, #tpu.memory_space<vmem>>, vector<1x8xf32>
    %c0_3 = arith.constant 0 : index
    %c0_4 = arith.constant 0 : index
    %c0_5 = arith.constant 0 : index
    %c0_6 = arith.constant 0 : index
    %2 = vector.load %arg1[%c0_3, %c0_4, %c0_5, %c0_6] : memref<1x4x196x75xf32, #tpu.memory_space<vmem>>, vector<1x1x196x75xf32>
    %3 = vector.shape_cast %2 : vector<1x1x196x75xf32> to vector<196x75xf32>
    %cst = arith.constant dense<0.000000e+00> : vector<196x8xf32>
    %4 = tpu.matmul %3, %0, %cst {dimension_numbers = #tpu.dot_dimension_numbers<[1], [0], [0], [1], [0, 0, 1, 1], [], []>} : vector<196x75xf32>, vector<75x8xf32>, vector<196x8xf32> -> vector<196x8xf32>
    %5 = vector.broadcast %1 : vector<1x8xf32> to vector<196x8xf32>
    %6 = arith.addf %4, %5 : vector<196x8xf32>
    %cst_7 = arith.constant 0.000000e+00 : f32
    %7 = vector.broadcast %cst_7 : f32 to vector<196x8xf32>
    %8 = arith.maximumf %6, %7 : vector<196x8xf32>
    %c0_8 = arith.constant 0 : index
    %c1 = arith.constant 1 : index
    %c0_9 = arith.constant 0 : index
    %c0_10 = arith.constant 0 : index
    %9 = vector.load %arg1[%c0_8, %c1, %c0_9, %c0_10] : memref<1x4x196x75xf32, #tpu.memory_space<vmem>>, vector<1x1x196x75xf32>
    %10 = vector.shape_cast %9 : vector<1x1x196x75xf32> to vector<196x75xf32>
    %cst_11 = arith.constant dense<0.000000e+00> : vector<196x8xf32>
    %11 = tpu.matmul %10, %0, %cst_11 {dimension_numbers = #tpu.dot_dimension_numbers<[1], [0], [0], [1], [0, 0, 1, 1], [], []>} : vector<196x75xf32>, vector<75x8xf32>, vector<196x8xf32> -> vector<196x8xf32>
    %12 = vector.broadcast %1 : vector<1x8xf32> to vector<196x8xf32>
    %13 = arith.addf %11, %12 : vector<196x8xf32>
    %cst_12 = arith.constant 0.000000e+00 : f32
    %14 = vector.broadcast %cst_12 : f32 to vector<196x8xf32>
    %15 = arith.maximumf %13, %14 : vector<196x8xf32>
    %16 = arith.maximumf %8, %15 : vector<196x8xf32>
    %c0_13 = arith.constant 0 : index
    %c2 = arith.constant 2 : index
    %c0_14 = arith.constant 0 : index
    %c0_15 = arith.constant 0 : index
    %17 = vector.load %arg1[%c0_13, %c2, %c0_14, %c0_15] : memref<1x4x196x75xf32, #tpu.memory_space<vmem>>, vector<1x1x196x75xf32>
    %18 = vector.shape_cast %17 : vector<1x1x196x75xf32> to vector<196x75xf32>
    %cst_16 = arith.constant dense<0.000000e+00> : vector<196x8xf32>
    %19 = tpu.matmul %18, %0, %cst_16 {dimension_numbers = #tpu.dot_dimension_numbers<[1], [0], [0], [1], [0, 0, 1, 1], [], []>} : vector<196x75xf32>, vector<75x8xf32>, vector<196x8xf32> -> vector<196x8xf32>
    %20 = vector.broadcast %1 : vector<1x8xf32> to vector<196x8xf32>
    %21 = arith.addf %19, %20 : vector<196x8xf32>
    %cst_17 = arith.constant 0.000000e+00 : f32
    %22 = vector.broadcast %cst_17 : f32 to vector<196x8xf32>
    %23 = arith.maximumf %21, %22 : vector<196x8xf32>
    %24 = arith.maximumf %16, %23 : vector<196x8xf32>
    %c0_18 = arith.constant 0 : index
    %c3 = arith.constant 3 : index
    %c0_19 = arith.constant 0 : index
    %c0_20 = arith.constant 0 : index
    %25 = vector.load %arg1[%c0_18, %c3, %c0_19, %c0_20] : memref<1x4x196x75xf32, #tpu.memory_space<vmem>>, vector<1x1x196x75xf32>
    %26 = vector.shape_cast %25 : vector<1x1x196x75xf32> to vector<196x75xf32>
    %cst_21 = arith.constant dense<0.000000e+00> : vector<196x8xf32>
    %27 = tpu.matmul %26, %0, %cst_21 {dimension_numbers = #tpu.dot_dimension_numbers<[1], [0], [0], [1], [0, 0, 1, 1], [], []>} : vector<196x75xf32>, vector<75x8xf32>, vector<196x8xf32> -> vector<196x8xf32>
    %28 = vector.broadcast %1 : vector<1x8xf32> to vector<196x8xf32>
    %29 = arith.addf %27, %28 : vector<196x8xf32>
    %cst_22 = arith.constant 0.000000e+00 : f32
    %30 = vector.broadcast %cst_22 : f32 to vector<196x8xf32>
    %31 = arith.maximumf %29, %30 : vector<196x8xf32>
    %32 = arith.maximumf %24, %31 : vector<196x8xf32>
    %c0_23 = arith.constant 0 : index
    %c0_24 = arith.constant 0 : index
    %c0_25 = arith.constant 0 : index
    %33 = vector.load %arg4[%c0_23, %c0_24, %c0_25] : memref<1x196x8xf32, #tpu.memory_space<vmem>>, vector<1x196x8xf32>
    %34 = vector.shape_cast %33 : vector<1x196x8xf32> to vector<196x8xf32>
    %35 = vector.shape_cast %32 : vector<196x8xf32> to vector<1x196x8xf32>
    tpu.vector_store %arg4[%c0_23, %c0_24, %c0_25], %35 {strides = array<i32>} : memref<1x196x8xf32, #tpu.memory_space<vmem>>, vector<1x196x8xf32>,
    return
  }
  func.func @transform_0(%arg0: i32) -> (i32, i32, i32, i32) {
    %c0_i32 = arith.constant 0 : i32
    %c0_i32_0 = arith.constant 0 : i32
    %c0_i32_1 = arith.constant 0 : i32
    %c0_i32_2 = arith.constant 0 : i32
    return %arg0, %c0_i32, %c0_i32_0, %c0_i32_1 : i32, i32, i32, i32
  }
  func.func @transform_1(%arg0: i32) -> (i32, i32) {
    %c0_i32 = arith.constant 0 : i32
    %c0_i32_0 = arith.constant 0 : i32
    %c0_i32_1 = arith.constant 0 : i32
    return %c0_i32, %c0_i32_0 : i32, i32
  }
  func.func @transform_2(%arg0: i32) -> (i32, i32) {
    %c0_i32 = arith.constant 0 : i32
    %c0_i32_0 = arith.constant 0 : i32
    %c0_i32_1 = arith.constant 0 : i32
    return %c0_i32, %c0_i32_0 : i32, i32
  }
  func.func @transform_3(%arg0: i32) -> (i32, i32, i32) {
    %c0_i32 = arith.constant 0 : i32
    %c0_i32_0 = arith.constant 0 : i32
    %c0_i32_1 = arith.constant 0 : i32
    return %arg0, %c0_i32, %c0_i32_0 : i32, i32, i32
  }
}

module attributes {stable_mosaic.version = 11 : i64} {
  func.func @_conv_relu_pool_kernel(%arg0: i32, %arg1: memref<1x4x25x200xf32, #tpu.memory_space<vmem>>, %arg2: memref<200x16xf32, #tpu.memory_space<vmem>>, %arg3: memref<1x16xf32, #tpu.memory_space<vmem>>, %arg4: memref<1x25x16xf32, #tpu.memory_space<vmem>>) attributes {dimension_semantics = [#tpu.dimension_semantics<parallel>], iteration_bounds = array<i64: 2>, scalar_prefetch = 0 : i64, scratch_operands = 0 : i64, tpu.core_type = #tpu.core_type<tc>, window_params = [{transform_indices = @transform_0, window_bounds = array<i64: 1, 4, 25, 200>}, {pipeline_mode = #tpu.pipeline_mode<synchronous>, transform_indices = @transform_1, window_bounds = array<i64: 200, 16>}, {pipeline_mode = #tpu.pipeline_mode<synchronous>, transform_indices = @transform_2, window_bounds = array<i64: 1, 16>}, {transform_indices = @transform_3, window_bounds = array<i64: 1, 25, 16>}]} {
    %c0 = arith.constant 0 : index
    %c0_0 = arith.constant 0 : index
    %0 = vector.load %arg2[%c0, %c0_0] : memref<200x16xf32, #tpu.memory_space<vmem>>, vector<200x16xf32>
    %c0_1 = arith.constant 0 : index
    %c0_2 = arith.constant 0 : index
    %1 = vector.load %arg3[%c0_1, %c0_2] : memref<1x16xf32, #tpu.memory_space<vmem>>, vector<1x16xf32>
    %c0_3 = arith.constant 0 : index
    %c0_4 = arith.constant 0 : index
    %c0_5 = arith.constant 0 : index
    %c0_6 = arith.constant 0 : index
    %2 = vector.load %arg1[%c0_3, %c0_4, %c0_5, %c0_6] : memref<1x4x25x200xf32, #tpu.memory_space<vmem>>, vector<1x1x25x200xf32>
    %3 = vector.shape_cast %2 : vector<1x1x25x200xf32> to vector<25x200xf32>
    %cst = arith.constant dense<0.000000e+00> : vector<25x16xf32>
    %4 = tpu.matmul %3, %0, %cst {dimension_numbers = #tpu.dot_dimension_numbers<[1], [0], [0], [1], [0, 0, 1, 1], [], []>} : vector<25x200xf32>, vector<200x16xf32>, vector<25x16xf32> -> vector<25x16xf32>
    %5 = vector.broadcast %1 : vector<1x16xf32> to vector<25x16xf32>
    %6 = arith.addf %4, %5 : vector<25x16xf32>
    %cst_7 = arith.constant 0.000000e+00 : f32
    %7 = vector.broadcast %cst_7 : f32 to vector<25x16xf32>
    %8 = arith.maximumf %6, %7 : vector<25x16xf32>
    %c0_8 = arith.constant 0 : index
    %c1 = arith.constant 1 : index
    %c0_9 = arith.constant 0 : index
    %c0_10 = arith.constant 0 : index
    %9 = vector.load %arg1[%c0_8, %c1, %c0_9, %c0_10] : memref<1x4x25x200xf32, #tpu.memory_space<vmem>>, vector<1x1x25x200xf32>
    %10 = vector.shape_cast %9 : vector<1x1x25x200xf32> to vector<25x200xf32>
    %cst_11 = arith.constant dense<0.000000e+00> : vector<25x16xf32>
    %11 = tpu.matmul %10, %0, %cst_11 {dimension_numbers = #tpu.dot_dimension_numbers<[1], [0], [0], [1], [0, 0, 1, 1], [], []>} : vector<25x200xf32>, vector<200x16xf32>, vector<25x16xf32> -> vector<25x16xf32>
    %12 = vector.broadcast %1 : vector<1x16xf32> to vector<25x16xf32>
    %13 = arith.addf %11, %12 : vector<25x16xf32>
    %cst_12 = arith.constant 0.000000e+00 : f32
    %14 = vector.broadcast %cst_12 : f32 to vector<25x16xf32>
    %15 = arith.maximumf %13, %14 : vector<25x16xf32>
    %16 = arith.maximumf %8, %15 : vector<25x16xf32>
    %c0_13 = arith.constant 0 : index
    %c2 = arith.constant 2 : index
    %c0_14 = arith.constant 0 : index
    %c0_15 = arith.constant 0 : index
    %17 = vector.load %arg1[%c0_13, %c2, %c0_14, %c0_15] : memref<1x4x25x200xf32, #tpu.memory_space<vmem>>, vector<1x1x25x200xf32>
    %18 = vector.shape_cast %17 : vector<1x1x25x200xf32> to vector<25x200xf32>
    %cst_16 = arith.constant dense<0.000000e+00> : vector<25x16xf32>
    %19 = tpu.matmul %18, %0, %cst_16 {dimension_numbers = #tpu.dot_dimension_numbers<[1], [0], [0], [1], [0, 0, 1, 1], [], []>} : vector<25x200xf32>, vector<200x16xf32>, vector<25x16xf32> -> vector<25x16xf32>
    %20 = vector.broadcast %1 : vector<1x16xf32> to vector<25x16xf32>
    %21 = arith.addf %19, %20 : vector<25x16xf32>
    %cst_17 = arith.constant 0.000000e+00 : f32
    %22 = vector.broadcast %cst_17 : f32 to vector<25x16xf32>
    %23 = arith.maximumf %21, %22 : vector<25x16xf32>
    %24 = arith.maximumf %16, %23 : vector<25x16xf32>
    %c0_18 = arith.constant 0 : index
    %c3 = arith.constant 3 : index
    %c0_19 = arith.constant 0 : index
    %c0_20 = arith.constant 0 : index
    %25 = vector.load %arg1[%c0_18, %c3, %c0_19, %c0_20] : memref<1x4x25x200xf32, #tpu.memory_space<vmem>>, vector<1x1x25x200xf32>
    %26 = vector.shape_cast %25 : vector<1x1x25x200xf32> to vector<25x200xf32>
    %cst_21 = arith.constant dense<0.000000e+00> : vector<25x16xf32>
    %27 = tpu.matmul %26, %0, %cst_21 {dimension_numbers = #tpu.dot_dimension_numbers<[1], [0], [0], [1], [0, 0, 1, 1], [], []>} : vector<25x200xf32>, vector<200x16xf32>, vector<25x16xf32> -> vector<25x16xf32>
    %28 = vector.broadcast %1 : vector<1x16xf32> to vector<25x16xf32>
    %29 = arith.addf %27, %28 : vector<25x16xf32>
    %cst_22 = arith.constant 0.000000e+00 : f32
    %30 = vector.broadcast %cst_22 : f32 to vector<25x16xf32>
    %31 = arith.maximumf %29, %30 : vector<25x16xf32>
    %32 = arith.maximumf %24, %31 : vector<25x16xf32>
    %c0_23 = arith.constant 0 : index
    %c0_24 = arith.constant 0 : index
    %c0_25 = arith.constant 0 : index
    %33 = vector.load %arg4[%c0_23, %c0_24, %c0_25] : memref<1x25x16xf32, #tpu.memory_space<vmem>>, vector<1x25x16xf32>
    %34 = vector.shape_cast %33 : vector<1x25x16xf32> to vector<25x16xf32>
    %35 = vector.shape_cast %32 : vector<25x16xf32> to vector<1x25x16xf32>
    tpu.vector_store %arg4[%c0_23, %c0_24, %c0_25], %35 {strides = array<i32>} : memref<1x25x16xf32, #tpu.memory_space<vmem>>, vector<1x25x16xf32>,
    return
  }
  func.func @transform_0(%arg0: i32) -> (i32, i32, i32, i32) {
    %c0_i32 = arith.constant 0 : i32
    %c0_i32_0 = arith.constant 0 : i32
    %c0_i32_1 = arith.constant 0 : i32
    %c0_i32_2 = arith.constant 0 : i32
    return %arg0, %c0_i32, %c0_i32_0, %c0_i32_1 : i32, i32, i32, i32
  }
  func.func @transform_1(%arg0: i32) -> (i32, i32) {
    %c0_i32 = arith.constant 0 : i32
    %c0_i32_0 = arith.constant 0 : i32
    %c0_i32_1 = arith.constant 0 : i32
    return %c0_i32, %c0_i32_0 : i32, i32
  }
  func.func @transform_2(%arg0: i32) -> (i32, i32) {
    %c0_i32 = arith.constant 0 : i32
    %c0_i32_0 = arith.constant 0 : i32
    %c0_i32_1 = arith.constant 0 : i32
    return %c0_i32, %c0_i32_0 : i32, i32
  }
  func.func @transform_3(%arg0: i32) -> (i32, i32, i32) {
    %c0_i32 = arith.constant 0 : i32
    %c0_i32_0 = arith.constant 0 : i32
    %c0_i32_1 = arith.constant 0 : i32
    return %arg0, %c0_i32, %c0_i32_0 : i32, i32, i32
  }
}

module attributes {stable_mosaic.version = 11 : i64} {
  func.func @_fc_fused_kernel(%arg0: memref<2x400xf32, #tpu.memory_space<vmem>>, %arg1: memref<400x128xf32, #tpu.memory_space<vmem>>, %arg2: memref<1x128xf32, #tpu.memory_space<vmem>>, %arg3: memref<128x128xf32, #tpu.memory_space<vmem>>, %arg4: memref<1x128xf32, #tpu.memory_space<vmem>>, %arg5: memref<128x128xf32, #tpu.memory_space<vmem>>, %arg6: memref<1x128xf32, #tpu.memory_space<vmem>>, %arg7: memref<2x128xf32, #tpu.memory_space<vmem>>) attributes {dimension_semantics = [], scalar_prefetch = 0 : i64, scratch_operands = 0 : i64, tpu.core_type = #tpu.core_type<tc>} {
    %c0 = arith.constant 0 : index
    %c0_0 = arith.constant 0 : index
    %0 = vector.load %arg0[%c0, %c0_0] : memref<2x400xf32, #tpu.memory_space<vmem>>, vector<2x400xf32>
    %c0_1 = arith.constant 0 : index
    %c0_2 = arith.constant 0 : index
    %1 = vector.load %arg1[%c0_1, %c0_2] : memref<400x128xf32, #tpu.memory_space<vmem>>, vector<400x128xf32>
    %cst = arith.constant dense<0.000000e+00> : vector<2x128xf32>
    %2 = tpu.matmul %0, %1, %cst {dimension_numbers = #tpu.dot_dimension_numbers<[1], [0], [0], [1], [0, 0, 1, 1], [], []>} : vector<2x400xf32>, vector<400x128xf32>, vector<2x128xf32> -> vector<2x128xf32>
    %c0_3 = arith.constant 0 : index
    %c0_4 = arith.constant 0 : index
    %3 = vector.load %arg2[%c0_3, %c0_4] : memref<1x128xf32, #tpu.memory_space<vmem>>, vector<1x128xf32>
    %4 = vector.broadcast %3 : vector<1x128xf32> to vector<2x128xf32>
    %5 = arith.addf %2, %4 : vector<2x128xf32>
    %cst_5 = arith.constant 0.000000e+00 : f32
    %6 = vector.broadcast %cst_5 : f32 to vector<2x128xf32>
    %7 = arith.maximumf %5, %6 : vector<2x128xf32>
    %c0_6 = arith.constant 0 : index
    %c0_7 = arith.constant 0 : index
    %8 = vector.load %arg3[%c0_6, %c0_7] : memref<128x128xf32, #tpu.memory_space<vmem>>, vector<128x128xf32>
    %cst_8 = arith.constant dense<0.000000e+00> : vector<2x128xf32>
    %9 = tpu.matmul %7, %8, %cst_8 {dimension_numbers = #tpu.dot_dimension_numbers<[1], [0], [0], [1], [0, 0, 1, 1], [], []>} : vector<2x128xf32>, vector<128x128xf32>, vector<2x128xf32> -> vector<2x128xf32>
    %c0_9 = arith.constant 0 : index
    %c0_10 = arith.constant 0 : index
    %10 = vector.load %arg4[%c0_9, %c0_10] : memref<1x128xf32, #tpu.memory_space<vmem>>, vector<1x128xf32>
    %11 = vector.broadcast %10 : vector<1x128xf32> to vector<2x128xf32>
    %12 = arith.addf %9, %11 : vector<2x128xf32>
    %cst_11 = arith.constant 0.000000e+00 : f32
    %13 = vector.broadcast %cst_11 : f32 to vector<2x128xf32>
    %14 = arith.maximumf %12, %13 : vector<2x128xf32>
    %c0_12 = arith.constant 0 : index
    %c0_13 = arith.constant 0 : index
    %15 = vector.load %arg5[%c0_12, %c0_13] : memref<128x128xf32, #tpu.memory_space<vmem>>, vector<128x128xf32>
    %cst_14 = arith.constant dense<0.000000e+00> : vector<2x128xf32>
    %16 = tpu.matmul %14, %15, %cst_14 {dimension_numbers = #tpu.dot_dimension_numbers<[1], [0], [0], [1], [0, 0, 1, 1], [], []>} : vector<2x128xf32>, vector<128x128xf32>, vector<2x128xf32> -> vector<2x128xf32>
    %c0_15 = arith.constant 0 : index
    %c0_16 = arith.constant 0 : index
    %17 = vector.load %arg6[%c0_15, %c0_16] : memref<1x128xf32, #tpu.memory_space<vmem>>, vector<1x128xf32>
    %18 = vector.broadcast %17 : vector<1x128xf32> to vector<2x128xf32>
    %19 = arith.addf %16, %18 : vector<2x128xf32>
    %cst_17 = arith.constant dense<0xFF800000> : vector<2xf32>
    %20 = vector.multi_reduction <maximumf>, %19, %cst_17 [1] : vector<2x128xf32> to vector<2xf32>
    %21 = vector.shape_cast %20 : vector<2xf32> to vector<2x1xf32>
    %22 = vector.broadcast %21 : vector<2x1xf32> to vector<2x128xf32>
    %23 = arith.subf %19, %22 : vector<2x128xf32>
    %24 = math.exp %23 : vector<2x128xf32>
    %cst_18 = arith.constant dense<0.000000e+00> : vector<2xf32>
    %25 = vector.multi_reduction <add>, %24, %cst_18 [1] : vector<2x128xf32> to vector<2xf32>
    %26 = vector.shape_cast %25 : vector<2xf32> to vector<2x1xf32>
    %27 = tpu.reciprocal %26 {approx = true} : vector<2x1xf32> -> vector<2x1xf32>
    %28 = vector.broadcast %27 : vector<2x1xf32> to vector<2x128xf32>
    %29 = arith.mulf %24, %28 : vector<2x128xf32>
    %c0_19 = arith.constant 0 : index
    %c0_20 = arith.constant 0 : index
    %30 = vector.load %arg7[%c0_19, %c0_20] : memref<2x128xf32, #tpu.memory_space<vmem>>, vector<2x128xf32>
    tpu.vector_store %arg7[%c0_19, %c0_20], %29 {strides = array<i32>} : memref<2x128xf32, #tpu.memory_space<vmem>>, vector<2x128xf32>,
    return
  }
}

</mosaic_0001>

<llo_original>
// kernel: lenet100_forward.3
$region0: #{lenet100_forward.3}
  #allocation0 [shape = 'u32[]', space=smem, size = 0x4, offset = 0x4, fixed_abs, tag = 'smem constant byte address 0x4 - core index']
  #allocation1 [shape = 'u32[144,128]{1,0:T(1,128)}', space=vmem, size = 0x12000, scoped, tag = 'internal scratch']
  %s0 = inlined_call_operand.vmem [shape: f32[2,4,196,75], index: 0, kind: input, shape index: {}]
  %s1 = inlined_call_operand.vmem [shape: f32[75,8], index: 1, kind: input, shape index: {}]
  %s2 = inlined_call_operand.vmem [shape: f32[1,8], index: 2, kind: input, shape index: {}]
  %s3 = inlined_call_operand.vmem [shape: f32[2,196,8], index: 3, kind: output, shape index: {}]
  %s4 = sld [smem:[#allocation0]]
  $region45: #{lenet100_forward.3} parent=0
    _
  %s6 = ssub.s32 1, %s4
  %s7 = scalar_select 0, %s6, %s4
  loop: start=0, step=1, limit=4
  $region2: #{lenet100_forward.3} parent=0 // loop_pre_header
    _
  $region3: #{lenet100_forward.3} parent=0 // loop_header
    %s9 = sphi 0, %s13
    %p10 = scmp.ge.s32.totalorder %s9, 4
    %s19 = sphi 0, %s21
    %s22 = sphi 0, %s19
    %s23 = sphi 0, %s22
    %s39 = sphi 0, %s23
    %s43 = sphi 0, %s43
    %s45 = sphi 0, %s43
    %s46 = sphi 0, %s45
    %s60 = sphi 0, %s46
    %s64 = sphi 0, %s64
    %s66 = sphi 0, %s64
    %s67 = sphi 0, %s66
    %s81 = sphi 0, %s67
    %s87 = sphi 0, %s89
    %s90 = sphi 0, %s87
    %s91 = sphi 0, %s90
    %s107 = sphi 0, %s91
  $region4: #{lenet100_forward.3} parent=0 // loop_header_branch
    %12 = sbr.rel (%p10) target = $region8
  $region5: #{lenet100_forward.3} parent=0 // loop_body
    %s14 = ssub.s32 %s9, 1
    %s15 = ssub.s32 %s9, 2
    %s16 = sadd.s32 %s9, 1
    %s17 = ssub.s32 %s9, %s16
    %p18 = scmp.eq.s32.totalorder %s17, 0
    %s20 = sadd.s32 %s19, 1
    %s21 = scalar_select %p18, %s19, %s20
    %p24 = pneg %p18
    %p25 = scmp.eq.s32.totalorder %s9, 1
    %p26 = por %p24, %p25
    %p27 = scmp.ne.s32.totalorder %s19, %s22
    %p28 = scmp.eq.s32.totalorder %s9, 0
    %p29 = por %p27, %p28
    %p30 = scmp.ne.s32.totalorder %s19, %s22
    %p31 = scmp.eq.s32.totalorder %s14, 1
    %p32 = por %p30, %p31
    %p33 = scmp.ne.s32.totalorder %s22, %s23
    %p34 = scmp.eq.s32.totalorder %s14, 0
    %p35 = por %p33, %p34
    %p36 = scmp.ne.s32.totalorder %s22, %s23
    %p37 = scmp.eq.s32.totalorder %s15, 1
    %p38 = por %p36, %p37
    %p40 = scmp.ne.s32.totalorder %s23, %s39
    %p41 = scmp.eq.s32.totalorder %s15, 0
    %p42 = por %p40, %p41
    %s44 = sadd.s32 %s43, 1
    %p47 = scmp.eq.s32.totalorder %s9, 1
    %p48 = scmp.ne.s32.totalorder %s43, %s45
    %p49 = scmp.eq.s32.totalorder %s9, 0
    %p50 = por %p48, %p49
    %p51 = scmp.ne.s32.totalorder %s43, %s45
    %p52 = scmp.eq.s32.totalorder %s14, 1
    %p53 = por %p51, %p52
    %p54 = scmp.ne.s32.totalorder %s45, %s46
    %p55 = scmp.eq.s32.totalorder %s14, 0
    %p56 = por %p54, %p55
    %p57 = scmp.ne.s32.totalorder %s45, %s46
    %p58 = scmp.eq.s32.totalorder %s15, 1
    %p59 = por %p57, %p58
    %p61 = scmp.ne.s32.totalorder %s46, %s60
    %p62 = scmp.eq.s32.totalorder %s15, 0
    %p63 = por %p61, %p62
    %s65 = sadd.s32 %s64, 1
    %p68 = scmp.eq.s32.totalorder %s9, 1
    %p69 = scmp.ne.s32.totalorder %s64, %s66
    %p70 = scmp.eq.s32.totalorder %s9, 0
    %p71 = por %p69, %p70
    %p72 = scmp.ne.s32.totalorder %s64, %s66
    %p73 = scmp.eq.s32.totalorder %s14, 1
    %p74 = por %p72, %p73
    %p75 = scmp.ne.s32.totalorder %s66, %s67
    %p76 = scmp.eq.s32.totalorder %s14, 0
    %p77 = por %p75, %p76
    %p78 = scmp.ne.s32.totalorder %s66, %s67
    %p79 = scmp.eq.s32.totalorder %s15, 1
    %p80 = por %p78, %p79
    %p82 = scmp.ne.s32.totalorder %s67, %s81
    %p83 = scmp.eq.s32.totalorder %s15, 0
    %p84 = por %p82, %p83
    %s85 = ssub.s32 %s9, %s16
    %p86 = scmp.eq.s32.totalorder %s85, 0
    %s88 = sadd.s32 %s87, 1
    %s89 = scalar_select %p86, %s87, %s88
    %p92 = pneg %p86
    %p93 = scmp.eq.s32.totalorder %s9, 1
    %p94 = por %p92, %p93
    %p95 = scmp.ne.s32.totalorder %s87, %s90
    %p96 = scmp.eq.s32.totalorder %s9, 0
    %p97 = por %p95, %p96
    %p98 = scmp.ne.s32.totalorder %s87, %s90
    %p99 = scmp.eq.s32.totalorder %s14, 1
    %p100 = por %p98, %p99
    %p101 = scmp.ne.s32.totalorder %s90, %s91
    %p102 = scmp.eq.s32.totalorder %s14, 0
    %p103 = por %p101, %p102
    %p104 = scmp.ne.s32.totalorder %s90, %s91
    %p105 = scmp.eq.s32.totalorder %s15, 1
    %p106 = por %p104, %p105
    %p108 = scmp.ne.s32.totalorder %s91, %s107
    %p109 = scmp.eq.s32.totalorder %s15, 0
    %p110 = por %p108, %p109
    %p111 = scmp.le.s32.totalorder 1, %s9
    %p112 = scmp.lt.s32.totalorder %s9, 3
    %p113 = pnand %p111, %p112
    %p114 = pneg %p113
    // Predicated region
    $region9: #{lenet100_forward.3} parent=5 // pred_check
      _
    $region10: #{lenet100_forward.3} parent=5 // pred_check_branch
      %116 = sbr.rel (%p113) target = $region12
    $region11: #{lenet100_forward.3} parent=5 // pred_region
      %s117 = ssub.s32 %s9, 1
      // Predicated region
      $region13: #{lenet100_forward.3} parent=11 // pred_check
        %p118 = pneg %p56
      $region14: #{lenet100_forward.3} parent=11 // pred_check_branch
        %120 = sbr.rel (%p118) target = $region16
      $region15: #{lenet100_forward.3} parent=11 // pred_region
        _
      $region16: #{lenet100_forward.3} parent=11 // pred_fallthru
        _
      // Predicated region
      $region17: #{lenet100_forward.3} parent=11 // pred_check
        %p121 = pneg %p77
      $region18: #{lenet100_forward.3} parent=11 // pred_check_branch
        %123 = sbr.rel (%p121) target = $region20
      $region19: #{lenet100_forward.3} parent=11 // pred_region
        _
      $region20: #{lenet100_forward.3} parent=11 // pred_fallthru
        _
    $region12: #{lenet100_forward.3} parent=5 // pred_fallthru
      _
    %p124 = scmp.lt.s32.totalorder %s9, 2
    // Predicated region
    $region21: #{lenet100_forward.3} parent=5 // pred_check
      %p125 = pneg %p124
    $region22: #{lenet100_forward.3} parent=5 // pred_check_branch
      %127 = sbr.rel (%p125) target = $region24
    $region23: #{lenet100_forward.3} parent=5 // pred_region
      // Predicated region
      $region25: #{lenet100_forward.3} parent=23 // pred_check
        %p128 = pneg %p29
      $region26: #{lenet100_forward.3} parent=23 // pred_check_branch
        %130 = sbr.rel (%p128) target = $region28
      $region27: #{lenet100_forward.3} parent=23 // pred_region
        %p131 = scmp.lt.s32.totalorder %s9, 1
        %s132 = scalar_select %p131, %s9, 1
        %s133 = smul.addr %s132, 100
        %s134 = smul.addr %s133, 8
        %s135 = scalar_lea.vmem %s0, %s134
      $region28: #{lenet100_forward.3} parent=23 // pred_fallthru
        _
    $region24: #{lenet100_forward.3} parent=5 // pred_fallthru
      _
    %p136 = scmp.le.s32.totalorder 1, %s9
    %p137 = scmp.lt.s32.totalorder %s9, 3
    %p138 = pnand %p136, %p137
    %p139 = pneg %p138
    // Predicated region
    $region29: #{lenet100_forward.3} parent=5 // pred_check
      _
    $region30: #{lenet100_forward.3} parent=5 // pred_check_branch
      %141 = sbr.rel (%p138) target = $region32
    $region31: #{lenet100_forward.3} parent=5 // pred_region
      %s142 = ssub.s32 %s9, 1
      %p143 = scmp.lt.s32.totalorder %s14, 1
      %s144 = scalar_select %p143, %s14, 1
      %s145 = smul.addr %s144, 100
      %s146 = smul.addr %s145, 8
      %s147 = scalar_lea.vmem %s0, %s146
      %p148 = pneg %p35
      %p149 = pneg %p32
      %p150 = pneg %p56
      %p151 = pneg %p53
      %p152 = pneg %p77
      %p153 = pneg %p74
      %p154 = pneg %p103
      %p155 = pneg %p100
      %p156 = scmp.lt.s32.totalorder %s14, 1
      %s157 = scalar_select %p156, %s14, 1
      %s158 = smul.addr %s157, 25
      %s159 = smul.addr %s158, 8
      %s160 = scalar_lea.vmem %s3, %s159
      %p161 = scmp.lt.s32.totalorder %s14, 1
      %s162 = scalar_select %p161, %s14, 1
      %s163 = smul.addr %s162, 100
      %s164 = smul.addr %s163, 8
      %s165 = scalar_lea.vmem %s0, %s164
      %p166 = scmp.lt.s32.totalorder %s14, 1
      %s167 = scalar_select %p166, %s14, 1
      %s168 = smul.addr %s167, 25
      %s169 = smul.addr %s168, 8
      %s170 = scalar_lea.vmem %s3, %s169
      %v171 = vld [vmem:[%s1] sm:$0xff]
      %v172 = vld [vmem:[%s1 + $0x8] sm:$0xff]
      %v173 = vld [vmem:[%s1 + $0x10] sm:$0xff]
      %v174 = vld [vmem:[%s1 + $0x18] sm:$0xff]
      %v175 = vld [vmem:[%s1 + $0x20] sm:$0xff]
      %v176 = vld [vmem:[%s1 + $0x28] sm:$0xff]
      %v177 = vld [vmem:[%s1 + $0x30] sm:$0xff]
      %v178 = vld [vmem:[%s1 + $0x38] sm:$0xff]
      %v179 = vld [vmem:[%s1 + $0x40] sm:$0xff]
      %v180 = vld [vmem:[%s1 + $0x48] sm:$0x7]
      %v181 = vld [vmem:[%s2] sm:$0x1]
      %v182 = vld [vmem:[%s165] sm:$0xff]
      %v183 = vld [vmem:[%s165 + $0x8] sm:$0xff]
      %v184 = vld [vmem:[%s165 + $0x10] sm:$0xff]
      %v185 = vld [vmem:[%s165 + $0x18] sm:$0xff]
      %v186 = vld [vmem:[%s165 + $0x20] sm:$0xff]
      %v187 = vld [vmem:[%s165 + $0x28] sm:$0xff]
      %v188 = vld [vmem:[%s165 + $0x30] sm:$0xff]
      %v189 = vld [vmem:[%s165 + $0x38] sm:$0xff]
      %v190 = vld [vmem:[%s165 + $0x40] sm:$0xff]
      %v191 = vld [vmem:[%s165 + $0x48] sm:$0xff]
      %v192 = vld [vmem:[%s165 + $0x50] sm:$0xff]
      %v193 = vld [vmem:[%s165 + $0x58] sm:$0xff]
      %v194 = vld [vmem:[%s165 + $0x60] sm:$0xff]
      %v195 = vld [vmem:[%s165 + $0x68] sm:$0xff]
      %v196 = vld [vmem:[%s165 + $0x70] sm:$0xff]
      %v197 = vld [vmem:[%s165 + $0x78] sm:$0xff]
      %v198 = vld [vmem:[%s165 + $0x80] sm:$0xff]
      %v199 = vld [vmem:[%s165 + $0x88] sm:$0xff]
      %v200 = vld [vmem:[%s165 + $0x90] sm:$0xff]
      %v201 = vld [vmem:[%s165 + $0x98] sm:$0xff]
      %v202 = vld [vmem:[%s165 + $0xa0] sm:$0xff]
      %v203 = vld [vmem:[%s165 + $0xa8] sm:$0xff]
      %v204 = vld [vmem:[%s165 + $0xb0] sm:$0xff]
      %v205 = vld [vmem:[%s165 + $0xb8] sm:$0xff]
      %v206 = vld [vmem:[%s165 + $0xc0] sm:$0xf]
      %v208 = vlaneseq
      %v209 = vshrl.u32 %v208, 7
      %v210 = vsub.s32 0, %v209
      %v211 = vrot.slane %v181, %v210
      %vm213 = vcmask 613376
      %v215 = vsel %vm213, %v182, 0
      %v218 = vsel %vm213, %v183, 0
      %v221 = vsel %vm213, %v184, 0
      %v224 = vsel %vm213, %v185, 0
      %v227 = vsel %vm213, %v186, 0
      %v230 = vsel %vm213, %v187, 0
      %v233 = vsel %vm213, %v188, 0
      %v236 = vsel %vm213, %v189, 0
      %v239 = vsel %vm213, %v190, 0
      %v242 = vsel %vm213, %v191, 0
      %v245 = vsel %vm213, %v192, 0
      %v248 = vsel %vm213, %v193, 0
      %v251 = vsel %vm213, %v194, 0
      %v254 = vsel %vm213, %v195, 0
      %v257 = vsel %vm213, %v196, 0
      %v260 = vsel %vm213, %v197, 0
      %v263 = vsel %vm213, %v198, 0
      %v266 = vsel %vm213, %v199, 0
      %v269 = vsel %vm213, %v200, 0
      %v272 = vsel %vm213, %v201, 0
      %v275 = vsel %vm213, %v202, 0
      %v278 = vsel %vm213, %v203, 0
      %v281 = vsel %vm213, %v204, 0
      %v284 = vsel %vm213, %v205, 0
      %v287 = vsel %vm213, %v206, 0
      %vm289 = vcmask 1042432
      %v291 = vsel %vm289, %v180, 0
      %293 = vmatprep.subr.mxu0 0.0
      %294 = vmatpush1.msra.mxu0 %v171
      %295 = vmatprep.subr.mxu0 0.0
      %296 = vmatpush1.msra.mxu0 %v172
      %297 = vmatprep.subr.mxu0 0.0
      %298 = vmatpush1.msra.mxu0 %v173
      %299 = vmatprep.subr.mxu0 0.0
      %300 = vmatpush1.msra.mxu0 %v174
      %301 = vmatprep.subr.mxu0 0.0
      %302 = vmatpush1.msra.mxu0 %v175
      %303 = vmatprep.subr.mxu0 0.0
      %304 = vmatpush1.msra.mxu0 %v176
      %305 = vmatprep.subr.mxu0 0.0
      %306 = vmatpush1.msra.mxu0 %v177
      %307 = vmatprep.subr.mxu0 0.0
      %308 = vmatpush1.msra.mxu0 %v178
      %309 = vmatprep.subr.mxu0 0.0
      %310 = vmatpush1.msra.mxu0 %v179
      %311 = vmatprep.subr.mxu0 0.0
      %312 = vmatpush1.msra.mxu0 %v291
      %313 = vmatprep.subr.mxu0 0.0
      %314 = vmatpush1.msra.mxu0 0.0
      %315 = vmatprep.subr.mxu0 0.0
      %316 = vmatpush1.msra.mxu0 0.0
      %317 = vmatprep.subr.mxu0 0.0
      %318 = vmatpush1.msra.mxu0 0.0
      %319 = vmatprep.subr.mxu0 0.0
      %320 = vmatpush1.msra.mxu0 0.0
      %321 = vmatprep.subr.mxu0 0.0
      %322 = vmatpush1.msra.mxu0 0.0
      %323 = vmatprep.subr.mxu0 0.0
      %324 = vmatpush1.msra.mxu0 0.0
      %325 = vmatprep.subr.mxu0 0.0
      %326 = vmatpush1.msra.mxu0 0.0
      %327 = vmatprep.subr.mxu0 0.0
      %328 = vmatpush1.msra.mxu0 0.0
      %329 = vmatprep.subr.mxu0 0.0
      %330 = vmatpush1.msra.mxu0 0.0
      %331 = vmatprep.subr.mxu0 0.0
      %332 = vmatpush1.msra.mxu0 0.0
      %333 = vmatprep.subr.mxu0 0.0
      %334 = vmatpush1.msra.mxu0 0.0
      %335 = vmatprep.subr.mxu0 0.0
      %336 = vmatpush1.msra.mxu0 0.0
      %337 = vmatprep.subr.mxu0 0.0
      %338 = vmatpush1.msra.mxu0 0.0
      %339 = vmatprep.subr.mxu0 0.0
      %340 = vmatpush1.msra.mxu0 0.0
      %341 = vmatprep.subr.mxu0 0.0
      %342 = vmatpush1.msra.mxu0 0.0
      %343 = vmatprep.subr.mxu0 0.0
      %344 = vmatpush1.msra.mxu0 0.0
      %345 = vmatprep.subr.mxu0 0.0
      %346 = vmatpush1.msra.mxu0 0.0
      %347 = vmatprep.subr.mxu0 0.0
      %348 = vmatpush1.msra.mxu0 0.0
      %349 = vmatprep.subr.mxu0 0.0
      %350 = vmatpush1.msra.mxu0 0.0
      %351 = vmatprep.subr.mxu0 0.0
      %352 = vmatpush1.msra.mxu0 0.0
      %353 = vmatprep.subr.mxu0 0.0
      %354 = vmatpush1.msra.mxu0 0.0
      %355 = vmatprep.subr.mxu0 0.0
      %356 = vmatpush1.msra.mxu0 0.0
      %357 = vmatprep.mubr.f32.mxu0 0.0
      %358 = vmatmul.mubr.f32.gmra.mrb[0].mxu0 %v215
      %v359 = vpop.f32.mrb[0].mxu0
      %v360 = vadd.f32 %v211, %v359
      %v361 = vpop.f32.mrb[0].mxu0
      %362 = vmatprep.mubr.f32.mxu0 0.0
      %363 = vmatmul.mubr.f32.gmra.mrb[0].mxu0 %v218
      %v364 = vpop.f32.mrb[0].mxu0
      %v365 = vadd.f32 %v211, %v364
      %v366 = vpop.f32.mrb[0].mxu0
      %367 = vmatprep.mubr.f32.mxu0 0.0
      %368 = vmatmul.mubr.f32.gmra.mrb[0].mxu0 %v221
      %v369 = vpop.f32.mrb[0].mxu0
      %v370 = vadd.f32 %v211, %v369
      %v371 = vpop.f32.mrb[0].mxu0
      %372 = vmatprep.mubr.f32.mxu0 0.0
      %373 = vmatmul.mubr.f32.gmra.mrb[0].mxu0 %v224
      %v374 = vpop.f32.mrb[0].mxu0
      %v375 = vadd.f32 %v211, %v374
      %v376 = vpop.f32.mrb[0].mxu0
      %377 = vmatprep.mubr.f32.mxu0 0.0
      %378 = vmatmul.mubr.f32.gmra.mrb[0].mxu0 %v227
      %v379 = vpop.f32.mrb[0].mxu0
      %v380 = vadd.f32 %v211, %v379
      %v381 = vpop.f32.mrb[0].mxu0
      %382 = vmatprep.mubr.f32.mxu0 0.0
      %383 = vmatmul.mubr.f32.gmra.mrb[0].mxu0 %v230
      %v384 = vpop.f32.mrb[0].mxu0
      %v385 = vadd.f32 %v211, %v384
      %v386 = vpop.f32.mrb[0].mxu0
      %387 = vmatprep.mubr.f32.mxu0 0.0
      %388 = vmatmul.mubr.f32.gmra.mrb[0].mxu0 %v233
      %v389 = vpop.f32.mrb[0].mxu0
      %v390 = vadd.f32 %v211, %v389
      %v391 = vpop.f32.mrb[0].mxu0
      %392 = vmatprep.mubr.f32.mxu0 0.0
      %393 = vmatmul.mubr.f32.gmra.mrb[0].mxu0 %v236
      %v394 = vpop.f32.mrb[0].mxu0
      %v395 = vadd.f32 %v211, %v394
      %v396 = vpop.f32.mrb[0].mxu0
      %397 = vmatprep.mubr.f32.mxu0 0.0
      %398 = vmatmul.mubr.f32.gmra.mrb[0].mxu0 %v239
      %v399 = vpop.f32.mrb[0].mxu0
      %v400 = vadd.f32 %v211, %v399
      %v401 = vpop.f32.mrb[0].mxu0
      %402 = vmatprep.mubr.f32.mxu0 0.0
      %403 = vmatmul.mubr.f32.gmra.mrb[0].mxu0 %v242
      %v404 = vpop.f32.mrb[0].mxu0
      %v405 = vadd.f32 %v211, %v404
      %v406 = vpop.f32.mrb[0].mxu0
      %407 = vmatprep.mubr.f32.mxu0 0.0
      %408 = vmatmul.mubr.f32.gmra.mrb[0].mxu0 %v245
      %v409 = vpop.f32.mrb[0].mxu0
      %v410 = vadd.f32 %v211, %v409
      %v411 = vpop.f32.mrb[0].mxu0
      %412 = vmatprep.mubr.f32.mxu0 0.0
      %413 = vmatmul.mubr.f32.gmra.mrb[0].mxu0 %v248
      %v414 = vpop.f32.mrb[0].mxu0
      %v415 = vadd.f32 %v211, %v414
      %v416 = vpop.f32.mrb[0].mxu0
      %417 = vmatprep.mubr.f32.mxu0 0.0
      %418 = vmatmul.mubr.f32.gmra.mrb[0].mxu0 %v251
      %v419 = vpop.f32.mrb[0].mxu0
      %v420 = vadd.f32 %v211, %v419
      %v421 = vpop.f32.mrb[0].mxu0
      %422 = vmatprep.mubr.f32.mxu0 0.0
      %423 = vmatmul.mubr.f32.gmra.mrb[0].mxu0 %v254
      %v424 = vpop.f32.mrb[0].mxu0
      %v425 = vadd.f32 %v211, %v424
      %v426 = vpop.f32.mrb[0].mxu0
      %427 = vmatprep.mubr.f32.mxu0 0.0
      %428 = vmatmul.mubr.f32.gmra.mrb[0].mxu0 %v257
      %v429 = vpop.f32.mrb[0].mxu0
      %v430 = vadd.f32 %v211, %v429
      %v431 = vpop.f32.mrb[0].mxu0
      %432 = vmatprep.mubr.f32.mxu0 0.0
      %433 = vmatmul.mubr.f32.gmra.mrb[0].mxu0 %v260
      %v434 = vpop.f32.mrb[0].mxu0
      %v435 = vadd.f32 %v211, %v434
      %v436 = vpop.f32.mrb[0].mxu0
      %437 = vmatprep.mubr.f32.mxu0 0.0
      %438 = vmatmul.mubr.f32.gmra.mrb[0].mxu0 %v263
      %v439 = vpop.f32.mrb[0].mxu0
      %v440 = vadd.f32 %v211, %v439
      %v441 = vpop.f32.mrb[0].mxu0
      %442 = vmatprep.mubr.f32.mxu0 0.0
      %443 = vmatmul.mubr.f32.gmra.mrb[0].mxu0 %v266
      %v444 = vpop.f32.mrb[0].mxu0
      %v445 = vadd.f32 %v211, %v444
      %v446 = vpop.f32.mrb[0].mxu0
      %447 = vmatprep.mubr.f32.mxu0 0.0
      %448 = vmatmul.mubr.f32.gmra.mrb[0].mxu0 %v269
      %v449 = vpop.f32.mrb[0].mxu0
      %v450 = vadd.f32 %v211, %v449
      %v451 = vpop.f32.mrb[0].mxu0
      %452 = vmatprep.mubr.f32.mxu0 0.0
      %453 = vmatmul.mubr.f32.gmra.mrb[0].mxu0 %v272
      %v454 = vpop.f32.mrb[0].mxu0
      %v455 = vadd.f32 %v211, %v454
      %v456 = vpop.f32.mrb[0].mxu0
      %457 = vmatprep.mubr.f32.mxu0 0.0
      %458 = vmatmul.mubr.f32.gmra.mrb[0].mxu0 %v275
      %v459 = vpop.f32.mrb[0].mxu0
      %v460 = vadd.f32 %v211, %v459
      %v461 = vpop.f32.mrb[0].mxu0
      %462 = vmatprep.mubr.f32.mxu0 0.0
      %463 = vmatmul.mubr.f32.gmra.mrb[0].mxu0 %v278
      %v464 = vpop.f32.mrb[0].mxu0
      %v465 = vadd.f32 %v211, %v464
      %v466 = vpop.f32.mrb[0].mxu0
      %467 = vmatprep.mubr.f32.mxu0 0.0
      %468 = vmatmul.mubr.f32.gmra.mrb[0].mxu0 %v281
      %v469 = vpop.f32.mrb[0].mxu0
      %v470 = vadd.f32 %v211, %v469
      %v471 = vpop.f32.mrb[0].mxu0
      %472 = vmatprep.mubr.f32.mxu0 0.0
      %473 = vmatmul.mubr.f32.gmra.mrb[0].mxu0 %v284
      %v474 = vpop.f32.mrb[0].mxu0
      %v475 = vadd.f32 %v211, %v474
      %v476 = vpop.f32.mrb[0].mxu0
      %477 = vmatprep.mubr.f32.mxu0 0.0
      %478 = vmatmul.mubr.f32.gmra.mrb[0].mxu0 %v287
      %v479 = vpop.f32.mrb[0].mxu0
      %v480 = vadd.f32 %v211, %v479
      %v481 = vpop.f32.mrb[0].mxu0
      %482 = vdwg.mxu0
      %v483 = vmax.f32 %v360, 0.0
      %v484 = vmax.f32 %v365, 0.0
      %v485 = vmax.f32 %v370, 0.0
      %v486 = vmax.f32 %v375, 0.0
      %v487 = vmax.f32 %v380, 0.0
      %v488 = vmax.f32 %v385, 0.0
      %v489 = vmax.f32 %v390, 0.0
      %v490 = vmax.f32 %v395, 0.0
      %v491 = vmax.f32 %v400, 0.0
      %v492 = vmax.f32 %v405, 0.0
      %v493 = vmax.f32 %v410, 0.0
      %v494 = vmax.f32 %v415, 0.0
      %v495 = vmax.f32 %v420, 0.0
      %v496 = vmax.f32 %v425, 0.0
      %v497 = vmax.f32 %v430, 0.0
      %v498 = vmax.f32 %v435, 0.0
      %v499 = vmax.f32 %v440, 0.0
      %v500 = vmax.f32 %v445, 0.0
      %v501 = vmax.f32 %v450, 0.0
      %v502 = vmax.f32 %v455, 0.0
      %v503 = vmax.f32 %v460, 0.0
      %v504 = vmax.f32 %v465, 0.0
      %v505 = vmax.f32 %v470, 0.0
      %v506 = vmax.f32 %v475, 0.0
      %v507 = vmax.f32 %v480, 0.0
      %s508 = scalar_lea.vmem %s165, 200
      %v509 = vld [vmem:[%s508] sm:$0xff]
      %v510 = vld [vmem:[%s508 + $0x8] sm:$0xff]
      %v511 = vld [vmem:[%s508 + $0x10] sm:$0xff]
      %v512 = vld [vmem:[%s508 + $0x18] sm:$0xff]
      %v513 = vld [vmem:[%s508 + $0x20] sm:$0xff]
      %v514 = vld [vmem:[%s508 + $0x28] sm:$0xff]
      %v515 = vld [vmem:[%s508 + $0x30] sm:$0xff]
      %v516 = vld [vmem:[%s508 + $0x38] sm:$0xff]
      %v517 = vld [vmem:[%s508 + $0x40] sm:$0xff]
      %v518 = vld [vmem:[%s508 + $0x48] sm:$0xff]
      %v519 = vld [vmem:[%s508 + $0x50] sm:$0xff]
      %v520 = vld [vmem:[%s508 + $0x58] sm:$0xff]
      %v521 = vld [vmem:[%s508 + $0x60] sm:$0xff]
      %v522 = vld [vmem:[%s508 + $0x68] sm:$0xff]
      %v523 = vld [vmem:[%s508 + $0x70] sm:$0xff]
      %v524 = vld [vmem:[%s508 + $0x78] sm:$0xff]
      %v525 = vld [vmem:[%s508 + $0x80] sm:$0xff]
      %v526 = vld [vmem:[%s508 + $0x88] sm:$0xff]
      %v527 = vld [vmem:[%s508 + $0x90] sm:$0xff]
      %v528 = vld [vmem:[%s508 + $0x98] sm:$0xff]
      %v529 = vld [vmem:[%s508 + $0xa0] sm:$0xff]
      %v530 = vld [vmem:[%s508 + $0xa8] sm:$0xff]
      %v531 = vld [vmem:[%s508 + $0xb0] sm:$0xff]
      %v532 = vld [vmem:[%s508 + $0xb8] sm:$0xff]
      %v533 = vld [vmem:[%s508 + $0xc0] sm:$0xf]
      %v535 = vsel %vm213, %v509, 0
      %v538 = vsel %vm213, %v510, 0
      %v541 = vsel %vm213, %v511, 0
      %v544 = vsel %vm213, %v512, 0
      %v547 = vsel %vm213, %v513, 0
      %v550 = vsel %vm213, %v514, 0
      %v553 = vsel %vm213, %v515, 0
      %v556 = vsel %vm213, %v516, 0
      %v559 = vsel %vm213, %v517, 0
      %v562 = vsel %vm213, %v518, 0
      %v565 = vsel %vm213, %v519, 0
      %v568 = vsel %vm213, %v520, 0
      %v571 = vsel %vm213, %v521, 0
      %v574 = vsel %vm213, %v522, 0
      %v577 = vsel %vm213, %v523, 0
      %v580 = vsel %vm213, %v524, 0
      %v583 = vsel %vm213, %v525, 0
      %v586 = vsel %vm213, %v526, 0
      %v589 = vsel %vm213, %v527, 0
      %v592 = vsel %vm213, %v528, 0
      %v595 = vsel %vm213, %v529, 0
      %v598 = vsel %vm213, %v530, 0
      %v601 = vsel %vm213, %v531, 0
      %v604 = vsel %vm213, %v532, 0
      %v607 = vsel %vm213, %v533, 0
      %609 = vmatprep.subr.mxu0 0.0
      %610 = vmatpush1.msra.mxu0 %v171
      %611 = vmatprep.subr.mxu0 0.0
      %612 = vmatpush1.msra.mxu0 %v172
      %613 = vmatprep.subr.mxu0 0.0
      %614 = vmatpush1.msra.mxu0 %v173
      %615 = vmatprep.subr.mxu0 0.0
      %616 = vmatpush1.msra.mxu0 %v174
      %617 = vmatprep.subr.mxu0 0.0
      %618 = vmatpush1.msra.mxu0 %v175
      %619 = vmatprep.subr.mxu0 0.0
      %620 = vmatpush1.msra.mxu0 %v176
      %621 = vmatprep.subr.mxu0 0.0
      %622 = vmatpush1.msra.mxu0 %v177
      %623 = vmatprep.subr.mxu0 0.0
      %624 = vmatpush1.msra.mxu0 %v178
      %625 = vmatprep.subr.mxu0 0.0
      %626 = vmatpush1.msra.mxu0 %v179
      %627 = vmatprep.subr.mxu0 0.0
      %628 = vmatpush1.msra.mxu0 %v291
      %629 = vmatprep.subr.mxu0 0.0
      %630 = vmatpush1.msra.mxu0 0.0
      %631 = vmatprep.subr.mxu0 0.0
      %632 = vmatpush1.msra.mxu0 0.0
      %633 = vmatprep.subr.mxu0 0.0
      %634 = vmatpush1.msra.mxu0 0.0
      %635 = vmatprep.subr.mxu0 0.0
      %636 = vmatpush1.msra.mxu0 0.0
      %637 = vmatprep.subr.mxu0 0.0
      %638 = vmatpush1.msra.mxu0 0.0
      %639 = vmatprep.subr.mxu0 0.0
      %640 = vmatpush1.msra.mxu0 0.0
      %641 = vmatprep.subr.mxu0 0.0
      %642 = vmatpush1.msra.mxu0 0.0
      %643 = vmatprep.subr.mxu0 0.0
      %644 = vmatpush1.msra.mxu0 0.0
      %645 = vmatprep.subr.mxu0 0.0
      %646 = vmatpush1.msra.mxu0 0.0
      %647 = vmatprep.subr.mxu0 0.0
      %648 = vmatpush1.msra.mxu0 0.0
      %649 = vmatprep.subr.mxu0 0.0
      %650 = vmatpush1.msra.mxu0 0.0
      %651 = vmatprep.subr.mxu0 0.0
      %652 = vmatpush1.msra.mxu0 0.0
      %653 = vmatprep.subr.mxu0 0.0
      %654 = vmatpush1.msra.mxu0 0.0
      %655 = vmatprep.subr.mxu0 0.0
      %656 = vmatpush1.msra.mxu0 0.0
      %657 = vmatprep.subr.mxu0 0.0
      %658 = vmatpush1.msra.mxu0 0.0
      %659 = vmatprep.subr.mxu0 0.0
      %660 = vmatpush1.msra.mxu0 0.0
      %661 = vmatprep.subr.mxu0 0.0
      %662 = vmatpush1.msra.mxu0 0.0
      %663 = vmatprep.subr.mxu0 0.0
      %664 = vmatpush1.msra.mxu0 0.0
      %665 = vmatprep.subr.mxu0 0.0
      %666 = vmatpush1.msra.mxu0 0.0
      %667 = vmatprep.subr.mxu0 0.0
      %668 = vmatpush1.msra.mxu0 0.0
      %669 = vmatprep.subr.mxu0 0.0
      %670 = vmatpush1.msra.mxu0 0.0
      %671 = vmatprep.subr.mxu0 0.0
      %672 = vmatpush1.msra.mxu0 0.0
      %673 = vmatprep.mubr.f32.mxu0 0.0
      %674 = vmatmul.mubr.f32.gmra.mrb[0].mxu0 %v535
      %v675 = vpop.f32.mrb[0].mxu0
      %v676 = vadd.f32 %v211, %v675
      %v677 = vpop.f32.mrb[0].mxu0
      %678 = vmatprep.mubr.f32.mxu0 0.0
      %679 = vmatmul.mubr.f32.gmra.mrb[0].mxu0 %v538
      %v680 = vpop.f32.mrb[0].mxu0
      %v681 = vadd.f32 %v211, %v680
      %v682 = vpop.f32.mrb[0].mxu0
      %683 = vmatprep.mubr.f32.mxu0 0.0
      %684 = vmatmul.mubr.f32.gmra.mrb[0].mxu0 %v541
      %v685 = vpop.f32.mrb[0].mxu0
      %v686 = vadd.f32 %v211, %v685
      %v687 = vpop.f32.mrb[0].mxu0
      %688 = vmatprep.mubr.f32.mxu0 0.0
      %689 = vmatmul.mubr.f32.gmra.mrb[0].mxu0 %v544
      %v690 = vpop.f32.mrb[0].mxu0
      %v691 = vadd.f32 %v211, %v690
      %v692 = vpop.f32.mrb[0].mxu0
      %693 = vmatprep.mubr.f32.mxu0 0.0
      %694 = vmatmul.mubr.f32.gmra.mrb[0].mxu0 %v547
      %v695 = vpop.f32.mrb[0].mxu0
      %v696 = vadd.f32 %v211, %v695
      %v697 = vpop.f32.mrb[0].mxu0
      %698 = vmatprep.mubr.f32.mxu0 0.0
      %699 = vmatmul.mubr.f32.gmra.mrb[0].mxu0 %v550
      %v700 = vpop.f32.mrb[0].mxu0
      %v701 = vadd.f32 %v211, %v700
      %v702 = vpop.f32.mrb[0].mxu0
      %703 = vmatprep.mubr.f32.mxu0 0.0
      %704 = vmatmul.mubr.f32.gmra.mrb[0].mxu0 %v553
      %v705 = vpop.f32.mrb[0].mxu0
      %v706 = vadd.f32 %v211, %v705
      %v707 = vpop.f32.mrb[0].mxu0
      %708 = vmatprep.mubr.f32.mxu0 0.0
      %709 = vmatmul.mubr.f32.gmra.mrb[0].mxu0 %v556
      %v710 = vpop.f32.mrb[0].mxu0
      %v711 = vadd.f32 %v211, %v710
      %v712 = vpop.f32.mrb[0].mxu0
      %713 = vmatprep.mubr.f32.mxu0 0.0
      %714 = vmatmul.mubr.f32.gmra.mrb[0].mxu0 %v559
      %v715 = vpop.f32.mrb[0].mxu0
      %v716 = vadd.f32 %v211, %v715
      %v717 = vpop.f32.mrb[0].mxu0
      %718 = vmatprep.mubr.f32.mxu0 0.0
      %719 = vmatmul.mubr.f32.gmra.mrb[0].mxu0 %v562
      %v720 = vpop.f32.mrb[0].mxu0
      %v721 = vadd.f32 %v211, %v720
      %v722 = vpop.f32.mrb[0].mxu0
      %723 = vmatprep.mubr.f32.mxu0 0.0
      %724 = vmatmul.mubr.f32.gmra.mrb[0].mxu0 %v565
      %v725 = vpop.f32.mrb[0].mxu0
      %v726 = vadd.f32 %v211, %v725
      %v727 = vpop.f32.mrb[0].mxu0
      %728 = vmatprep.mubr.f32.mxu0 0.0
      %729 = vmatmul.mubr.f32.gmra.mrb[0].mxu0 %v568
      %v730 = vpop.f32.mrb[0].mxu0
      %v731 = vadd.f32 %v211, %v730
      %v732 = vpop.f32.mrb[0].mxu0
      %733 = vmatprep.mubr.f32.mxu0 0.0
      %734 = vmatmul.mubr.f32.gmra.mrb[0].mxu0 %v571
      %v735 = vpop.f32.mrb[0].mxu0
      %v736 = vadd.f32 %v211, %v735
      %v737 = vpop.f32.mrb[0].mxu0
      %738 = vmatprep.mubr.f32.mxu0 0.0
      %739 = vmatmul.mubr.f32.gmra.mrb[0].mxu0 %v574
      %v740 = vpop.f32.mrb[0].mxu0
      %v741 = vadd.f32 %v211, %v740
      %v742 = vpop.f32.mrb[0].mxu0
      %743 = vmatprep.mubr.f32.mxu0 0.0
      %744 = vmatmul.mubr.f32.gmra.mrb[0].mxu0 %v577
      %v745 = vpop.f32.mrb[0].mxu0
      %v746 = vadd.f32 %v211, %v745
      %v747 = vpop.f32.mrb[0].mxu0
      %748 = vmatprep.mubr.f32.mxu0 0.0
      %749 = vmatmul.mubr.f32.gmra.mrb[0].mxu0 %v580
      %v750 = vpop.f32.mrb[0].mxu0
      %v751 = vadd.f32 %v211, %v750
      %v752 = vpop.f32.mrb[0].mxu0
      %753 = vmatprep.mubr.f32.mxu0 0.0
      %754 = vmatmul.mubr.f32.gmra.mrb[0].mxu0 %v583
      %v755 = vpop.f32.mrb[0].mxu0
      %v756 = vadd.f32 %v211, %v755
      %v757 = vpop.f32.mrb[0].mxu0
      %758 = vmatprep.mubr.f32.mxu0 0.0
      %759 = vmatmul.mubr.f32.gmra.mrb[0].mxu0 %v586
      %v760 = vpop.f32.mrb[0].mxu0
      %v761 = vadd.f32 %v211, %v760
      %v762 = vpop.f32.mrb[0].mxu0
      %763 = vmatprep.mubr.f32.mxu0 0.0
      %764 = vmatmul.mubr.f32.gmra.mrb[0].mxu0 %v589
      %v765 = vpop.f32.mrb[0].mxu0
      %v766 = vadd.f32 %v211, %v765
      %v767 = vpop.f32.mrb[0].mxu0
      %768 = vmatprep.mubr.f32.mxu0 0.0
      %769 = vmatmul.mubr.f32.gmra.mrb[0].mxu0 %v592
      %v770 = vpop.f32.mrb[0].mxu0
      %v771 = vadd.f32 %v211, %v770
      %v772 = vpop.f32.mrb[0].mxu0
      %773 = vmatprep.mubr.f32.mxu0 0.0
      %774 = vmatmul.mubr.f32.gmra.mrb[0].mxu0 %v595
      %v775 = vpop.f32.mrb[0].mxu0
      %v776 = vadd.f32 %v211, %v775
      %v777 = vpop.f32.mrb[0].mxu0
      %778 = vmatprep.mubr.f32.mxu0 0.0
      %779 = vmatmul.mubr.f32.gmra.mrb[0].mxu0 %v598
      %v780 = vpop.f32.mrb[0].mxu0
      %v781 = vadd.f32 %v211, %v780
      %v782 = vpop.f32.mrb[0].mxu0
      %783 = vmatprep.mubr.f32.mxu0 0.0
      %784 = vmatmul.mubr.f32.gmra.mrb[0].mxu0 %v601
      %v785 = vpop.f32.mrb[0].mxu0
      %v786 = vadd.f32 %v211, %v785
      %v787 = vpop.f32.mrb[0].mxu0
      %788 = vmatprep.mubr.f32.mxu0 0.0
      %789 = vmatmul.mubr.f32.gmra.mrb[0].mxu0 %v604
      %v790 = vpop.f32.mrb[0].mxu0
      %v791 = vadd.f32 %v211, %v790
      %v792 = vpop.f32.mrb[0].mxu0
      %793 = vmatprep.mubr.f32.mxu0 0.0
      %794 = vmatmul.mubr.f32.gmra.mrb[0].mxu0 %v607
      %v795 = vpop.f32.mrb[0].mxu0
      %v796 = vadd.f32 %v211, %v795
      %v797 = vpop.f32.mrb[0].mxu0
      %798 = vdwg.mxu0
      %v799 = vmax.f32 %v676, 0.0
      %v800 = vmax.f32 %v681, 0.0
      %v801 = vmax.f32 %v686, 0.0
      %v802 = vmax.f32 %v691, 0.0
      %v803 = vmax.f32 %v696, 0.0
      %v804 = vmax.f32 %v701, 0.0
      %v805 = vmax.f32 %v706, 0.0
      %v806 = vmax.f32 %v711, 0.0
      %v807 = vmax.f32 %v716, 0.0
      %v808 = vmax.f32 %v721, 0.0
      %v809 = vmax.f32 %v726, 0.0
      %v810 = vmax.f32 %v731, 0.0
      %v811 = vmax.f32 %v736, 0.0
      %v812 = vmax.f32 %v741, 0.0
      %v813 = vmax.f32 %v746, 0.0
      %v814 = vmax.f32 %v751, 0.0
      %v815 = vmax.f32 %v756, 0.0
      %v816 = vmax.f32 %v761, 0.0
      %v817 = vmax.f32 %v766, 0.0
      %v818 = vmax.f32 %v771, 0.0
      %v819 = vmax.f32 %v776, 0.0
      %v820 = vmax.f32 %v781, 0.0
      %v821 = vmax.f32 %v786, 0.0
      %v822 = vmax.f32 %v791, 0.0
      %v823 = vmax.f32 %v796, 0.0
      %v824 = vmax.f32 %v483, %v799
      %v825 = vmax.f32 %v484, %v800
      %v826 = vmax.f32 %v485, %v801
      %v827 = vmax.f32 %v486, %v802
      %v828 = vmax.f32 %v487, %v803
      %v829 = vmax.f32 %v488, %v804
      %v830 = vmax.f32 %v489, %v805
      %v831 = vmax.f32 %v490, %v806
      %v832 = vmax.f32 %v491, %v807
      %v833 = vmax.f32 %v492, %v808
      %v834 = vmax.f32 %v493, %v809
      %v835 = vmax.f32 %v494, %v810
      %v836 = vmax.f32 %v495, %v811
      %v837 = vmax.f32 %v496, %v812
      %v838 = vmax.f32 %v497, %v813
      %v839 = vmax.f32 %v498, %v814
      %v840 = vmax.f32 %v499, %v815
      %v841 = vmax.f32 %v500, %v816
      %v842 = vmax.f32 %v501, %v817
      %v843 = vmax.f32 %v502, %v818
      %v844 = vmax.f32 %v503, %v819
      %v845 = vmax.f32 %v504, %v820
      %v846 = vmax.f32 %v505, %v821
      %v847 = vmax.f32 %v506, %v822
      %v848 = vmax.f32 %v507, %v823
      %s849 = scalar_lea.vmem %s165, 400
      %v850 = vld [vmem:[%s849] sm:$0xff]
      %v851 = vld [vmem:[%s849 + $0x8] sm:$0xff]
      %v852 = vld [vmem:[%s849 + $0x10] sm:$0xff]
      %v853 = vld [vmem:[%s849 + $0x18] sm:$0xff]
      %v854 = vld [vmem:[%s849 + $0x20] sm:$0xff]
      %v855 = vld [vmem:[%s849 + $0x28] sm:$0xff]
      %v856 = vld [vmem:[%s849 + $0x30] sm:$0xff]
      %v857 = vld [vmem:[%s849 + $0x38] sm:$0xff]
      %v858 = vld [vmem:[%s849 + $0x40] sm:$0xff]
      %v859 = vld [vmem:[%s849 + $0x48] sm:$0xff]
      %v860 = vld [vmem:[%s849 + $0x50] sm:$0xff]
      %v861 = vld [vmem:[%s849 + $0x58] sm:$0xff]
      %v862 = vld [vmem:[%s849 + $0x60] sm:$0xff]
      %v863 = vld [vmem:[%s849 + $0x68] sm:$0xff]
      %v864 = vld [vmem:[%s849 + $0x70] sm:$0xff]
      %v865 = vld [vmem:[%s849 + $0x78] sm:$0xff]
      %v866 = vld [vmem:[%s849 + $0x80] sm:$0xff]
      %v867 = vld [vmem:[%s849 + $0x88] sm:$0xff]
      %v868 = vld [vmem:[%s849 + $0x90] sm:$0xff]
      %v869 = vld [vmem:[%s849 + $0x98] sm:$0xff]
      %v870 = vld [vmem:[%s849 + $0xa0] sm:$0xff]
      %v871 = vld [vmem:[%s849 + $0xa8] sm:$0xff]
      %v872 = vld [vmem:[%s849 + $0xb0] sm:$0xff]
      %v873 = vld [vmem:[%s849 + $0xb8] sm:$0xff]
      %v874 = vld [vmem:[%s849 + $0xc0] sm:$0xf]
      %v876 = vsel %vm213, %v850, 0
      %v879 = vsel %vm213, %v851, 0
      %v882 = vsel %vm213, %v852, 0
      %v885 = vsel %vm213, %v853, 0
      %v888 = vsel %vm213, %v854, 0
      %v891 = vsel %vm213, %v855, 0
      %v894 = vsel %vm213, %v856, 0
      %v897 = vsel %vm213, %v857, 0
      %v900 = vsel %vm213, %v858, 0
      %v903 = vsel %vm213, %v859, 0
      %v906 = vsel %vm213, %v860, 0
      %v909 = vsel %vm213, %v861, 0
      %v912 = vsel %vm213, %v862, 0
      %v915 = vsel %vm213, %v863, 0
      %v918 = vsel %vm213, %v864, 0
      %v921 = vsel %vm213, %v865, 0
      %v924 = vsel %vm213, %v866, 0
      %v927 = vsel %vm213, %v867, 0
      %v930 = vsel %vm213, %v868, 0
      %v933 = vsel %vm213, %v869, 0
      %v936 = vsel %vm213, %v870, 0
      %v939 = vsel %vm213, %v871, 0
      %v942 = vsel %vm213, %v872, 0
      %v945 = vsel %vm213, %v873, 0
      %v948 = vsel %vm213, %v874, 0
      %950 = vmatprep.subr.mxu0 0.0
      %951 = vmatpush1.msra.mxu0 %v171
      %952 = vmatprep.subr.mxu0 0.0
      %953 = vmatpush1.msra.mxu0 %v172
      %954 = vmatprep.subr.mxu0 0.0
      %955 = vmatpush1.msra.mxu0 %v173
      %956 = vmatprep.subr.mxu0 0.0
      %957 = vmatpush1.msra.mxu0 %v174
      %958 = vmatprep.subr.mxu0 0.0
      %959 = vmatpush1.msra.mxu0 %v175
      %960 = vmatprep.subr.mxu0 0.0
      %961 = vmatpush1.msra.mxu0 %v176
      %962 = vmatprep.subr.mxu0 0.0
      %963 = vmatpush1.msra.mxu0 %v177
      %964 = vmatprep.subr.mxu0 0.0
      %965 = vmatpush1.msra.mxu0 %v178
      %966 = vmatprep.subr.mxu0 0.0
      %967 = vmatpush1.msra.mxu0 %v179
      %968 = vmatprep.subr.mxu0 0.0
      %969 = vmatpush1.msra.mxu0 %v291
      %970 = vmatprep.subr.mxu0 0.0
      %971 = vmatpush1.msra.mxu0 0.0
      %972 = vmatprep.subr.mxu0 0.0
      %973 = vmatpush1.msra.mxu0 0.0
      %974 = vmatprep.subr.mxu0 0.0
      %975 = vmatpush1.msra.mxu0 0.0
      %976 = vmatprep.subr.mxu0 0.0
      %977 = vmatpush1.msra.mxu0 0.0
      %978 = vmatprep.subr.mxu0 0.0
      %979 = vmatpush1.msra.mxu0 0.0
      %980 = vmatprep.subr.mxu0 0.0
      %981 = vmatpush1.msra.mxu0 0.0
      %982 = vmatprep.subr.mxu0 0.0
      %983 = vmatpush1.msra.mxu0 0.0
      %984 = vmatprep.subr.mxu0 0.0
      %985 = vmatpush1.msra.mxu0 0.0
      %986 = vmatprep.subr.mxu0 0.0
      %987 = vmatpush1.msra.mxu0 0.0
      %988 = vmatprep.subr.mxu0 0.0
      %989 = vmatpush1.msra.mxu0 0.0
      %990 = vmatprep.subr.mxu0 0.0
      %991 = vmatpush1.msra.mxu0 0.0
      %992 = vmatprep.subr.mxu0 0.0
      %993 = vmatpush1.msra.mxu0 0.0
      %994 = vmatprep.subr.mxu0 0.0
      %995 = vmatpush1.msra.mxu0 0.0
      %996 = vmatprep.subr.mxu0 0.0
      %997 = vmatpush1.msra.mxu0 0.0
      %998 = vmatprep.subr.mxu0 0.0
      %999 = vmatpush1.msra.mxu0 0.0
      %1000 = vmatprep.subr.mxu0 0.0
      %1001 = vmatpush1.msra.mxu0 0.0
      %1002 = vmatprep.subr.mxu0 0.0
      %1003 = vmatpush1.msra.mxu0 0.0
      %1004 = vmatprep.subr.mxu0 0.0
      %1005 = vmatpush1.msra.mxu0 0.0
      %1006 = vmatprep.subr.mxu0 0.0
      %1007 = vmatpush1.msra.mxu0 0.0
      %1008 = vmatprep.subr.mxu0 0.0
      %1009 = vmatpush1.msra.mxu0 0.0
      %1010 = vmatprep.subr.mxu0 0.0
      %1011 = vmatpush1.msra.mxu0 0.0
      %1012 = vmatprep.subr.mxu0 0.0
      %1013 = vmatpush1.msra.mxu0 0.0
      %1014 = vmatprep.mubr.f32.mxu0 0.0
      %1015 = vmatmul.mubr.f32.gmra.mrb[0].mxu0 %v876
      %v1016 = vpop.f32.mrb[0].mxu0
      %v1017 = vadd.f32 %v211, %v1016
      %v1018 = vpop.f32.mrb[0].mxu0
      %1019 = vmatprep.mubr.f32.mxu0 0.0
      %1020 = vmatmul.mubr.f32.gmra.mrb[0].mxu0 %v879
      %v1021 = vpop.f32.mrb[0].mxu0
      %v1022 = vadd.f32 %v211, %v1021
      %v1023 = vpop.f32.mrb[0].mxu0
      %1024 = vmatprep.mubr.f32.mxu0 0.0
      %1025 = vmatmul.mubr.f32.gmra.mrb[0].mxu0 %v882
      %v1026 = vpop.f32.mrb[0].mxu0
      %v1027 = vadd.f32 %v211, %v1026
      %v1028 = vpop.f32.mrb[0].mxu0
      %1029 = vmatprep.mubr.f32.mxu0 0.0
      %1030 = vmatmul.mubr.f32.gmra.mrb[0].mxu0 %v885
      %v1031 = vpop.f32.mrb[0].mxu0
      %v1032 = vadd.f32 %v211, %v1031
      %v1033 = vpop.f32.mrb[0].mxu0
      %1034 = vmatprep.mubr.f32.mxu0 0.0
      %1035 = vmatmul.mubr.f32.gmra.mrb[0].mxu0 %v888
      %v1036 = vpop.f32.mrb[0].mxu0
      %v1037 = vadd.f32 %v211, %v1036
      %v1038 = vpop.f32.mrb[0].mxu0
      %1039 = vmatprep.mubr.f32.mxu0 0.0
      %1040 = vmatmul.mubr.f32.gmra.mrb[0].mxu0 %v891
      %v1041 = vpop.f32.mrb[0].mxu0
      %v1042 = vadd.f32 %v211, %v1041
      %v1043 = vpop.f32.mrb[0].mxu0
      %1044 = vmatprep.mubr.f32.mxu0 0.0
      %1045 = vmatmul.mubr.f32.gmra.mrb[0].mxu0 %v894
      %v1046 = vpop.f32.mrb[0].mxu0
      %v1047 = vadd.f32 %v211, %v1046
      %v1048 = vpop.f32.mrb[0].mxu0
      %1049 = vmatprep.mubr.f32.mxu0 0.0
      %1050 = vmatmul.mubr.f32.gmra.mrb[0].mxu0 %v897
      %v1051 = vpop.f32.mrb[0].mxu0
      %v1052 = vadd.f32 %v211, %v1051
      %v1053 = vpop.f32.mrb[0].mxu0
      %1054 = vmatprep.mubr.f32.mxu0 0.0
      %1055 = vmatmul.mubr.f32.gmra.mrb[0].mxu0 %v900
      %v1056 = vpop.f32.mrb[0].mxu0
      %v1057 = vadd.f32 %v211, %v1056
      %v1058 = vpop.f32.mrb[0].mxu0
      %1059 = vmatprep.mubr.f32.mxu0 0.0
      %1060 = vmatmul.mubr.f32.gmra.mrb[0].mxu0 %v903
      %v1061 = vpop.f32.mrb[0].mxu0
      %v1062 = vadd.f32 %v211, %v1061
      %v1063 = vpop.f32.mrb[0].mxu0
      %1064 = vmatprep.mubr.f32.mxu0 0.0
      %1065 = vmatmul.mubr.f32.gmra.mrb[0].mxu0 %v906
      %v1066 = vpop.f32.mrb[0].mxu0
      %v1067 = vadd.f32 %v211, %v1066
      %v1068 = vpop.f32.mrb[0].mxu0
      %1069 = vmatprep.mubr.f32.mxu0 0.0
      %1070 = vmatmul.mubr.f32.gmra.mrb[0].mxu0 %v909
      %v1071 = vpop.f32.mrb[0].mxu0
      %v1072 = vadd.f32 %v211, %v1071
      %v1073 = vpop.f32.mrb[0].mxu0
      %1074 = vmatprep.mubr.f32.mxu0 0.0
      %1075 = vmatmul.mubr.f32.gmra.mrb[0].mxu0 %v912
      %v1076 = vpop.f32.mrb[0].mxu0
      %v1077 = vadd.f32 %v211, %v1076
      %v1078 = vpop.f32.mrb[0].mxu0
      %1079 = vmatprep.mubr.f32.mxu0 0.0
      %1080 = vmatmul.mubr.f32.gmra.mrb[0].mxu0 %v915
      %v1081 = vpop.f32.mrb[0].mxu0
      %v1082 = vadd.f32 %v211, %v1081
      %v1083 = vpop.f32.mrb[0].mxu0
      %1084 = vmatprep.mubr.f32.mxu0 0.0
      %1085 = vmatmul.mubr.f32.gmra.mrb[0].mxu0 %v918
      %v1086 = vpop.f32.mrb[0].mxu0
      %v1087 = vadd.f32 %v211, %v1086
      %v1088 = vpop.f32.mrb[0].mxu0
      %1089 = vmatprep.mubr.f32.mxu0 0.0
      %1090 = vmatmul.mubr.f32.gmra.mrb[0].mxu0 %v921
      %v1091 = vpop.f32.mrb[0].mxu0
      %v1092 = vadd.f32 %v211, %v1091
      %v1093 = vpop.f32.mrb[0].mxu0
      %1094 = vmatprep.mubr.f32.mxu0 0.0
      %1095 = vmatmul.mubr.f32.gmra.mrb[0].mxu0 %v924
      %v1096 = vpop.f32.mrb[0].mxu0
      %v1097 = vadd.f32 %v211, %v1096
      %v1098 = vpop.f32.mrb[0].mxu0
      %1099 = vmatprep.mubr.f32.mxu0 0.0
      %1100 = vmatmul.mubr.f32.gmra.mrb[0].mxu0 %v927
      %v1101 = vpop.f32.mrb[0].mxu0
      %v1102 = vadd.f32 %v211, %v1101
      %v1103 = vpop.f32.mrb[0].mxu0
      %1104 = vmatprep.mubr.f32.mxu0 0.0
      %1105 = vmatmul.mubr.f32.gmra.mrb[0].mxu0 %v930
      %v1106 = vpop.f32.mrb[0].mxu0
      %v1107 = vadd.f32 %v211, %v1106
      %v1108 = vpop.f32.mrb[0].mxu0
      %1109 = vmatprep.mubr.f32.mxu0 0.0
      %1110 = vmatmul.mubr.f32.gmra.mrb[0].mxu0 %v933
      %v1111 = vpop.f32.mrb[0].mxu0
      %v1112 = vadd.f32 %v211, %v1111
      %v1113 = vpop.f32.mrb[0].mxu0
      %1114 = vmatprep.mubr.f32.mxu0 0.0
      %1115 = vmatmul.mubr.f32.gmra.mrb[0].mxu0 %v936
      %v1116 = vpop.f32.mrb[0].mxu0
      %v1117 = vadd.f32 %v211, %v1116
      %v1118 = vpop.f32.mrb[0].mxu0
      %1119 = vmatprep.mubr.f32.mxu0 0.0
      %1120 = vmatmul.mubr.f32.gmra.mrb[0].mxu0 %v939
      %v1121 = vpop.f32.mrb[0].mxu0
      %v1122 = vadd.f32 %v211, %v1121
      %v1123 = vpop.f32.mrb[0].mxu0
      %1124 = vmatprep.mubr.f32.mxu0 0.0
      %1125 = vmatmul.mubr.f32.gmra.mrb[0].mxu0 %v942
      %v1126 = vpop.f32.mrb[0].mxu0
      %v1127 = vadd.f32 %v211, %v1126
      %v1128 = vpop.f32.mrb[0].mxu0
      %1129 = vmatprep.mubr.f32.mxu0 0.0
      %1130 = vmatmul.mubr.f32.gmra.mrb[0].mxu0 %v945
      %v1131 = vpop.f32.mrb[0].mxu0
      %v1132 = vadd.f32 %v211, %v1131
      %v1133 = vpop.f32.mrb[0].mxu0
      %1134 = vmatprep.mubr.f32.mxu0 0.0
      %1135 = vmatmul.mubr.f32.gmra.mrb[0].mxu0 %v948
      %v1136 = vpop.f32.mrb[0].mxu0
      %v1137 = vadd.f32 %v211, %v1136
      %v1138 = vpop.f32.mrb[0].mxu0
      %1139 = vdwg.mxu0
      %v1140 = vmax.f32 %v1017, 0.0
      %v1141 = vmax.f32 %v1022, 0.0
      %v1142 = vmax.f32 %v1027, 0.0
      %v1143 = vmax.f32 %v1032, 0.0
      %v1144 = vmax.f32 %v1037, 0.0
      %v1145 = vmax.f32 %v1042, 0.0
      %v1146 = vmax.f32 %v1047, 0.0
      %v1147 = vmax.f32 %v1052, 0.0
      %v1148 = vmax.f32 %v1057, 0.0
      %v1149 = vmax.f32 %v1062, 0.0
      %v1150 = vmax.f32 %v1067, 0.0
      %v1151 = vmax.f32 %v1072, 0.0
      %v1152 = vmax.f32 %v1077, 0.0
      %v1153 = vmax.f32 %v1082, 0.0
      %v1154 = vmax.f32 %v1087, 0.0
      %v1155 = vmax.f32 %v1092, 0.0
      %v1156 = vmax.f32 %v1097, 0.0
      %v1157 = vmax.f32 %v1102, 0.0
      %v1158 = vmax.f32 %v1107, 0.0
      %v1159 = vmax.f32 %v1112, 0.0
      %v1160 = vmax.f32 %v1117, 0.0
      %v1161 = vmax.f32 %v1122, 0.0
      %v1162 = vmax.f32 %v1127, 0.0
      %v1163 = vmax.f32 %v1132, 0.0
      %v1164 = vmax.f32 %v1137, 0.0
      %v1165 = vmax.f32 %v824, %v1140
      %v1166 = vmax.f32 %v825, %v1141
      %v1167 = vmax.f32 %v826, %v1142
      %v1168 = vmax.f32 %v827, %v1143
      %v1169 = vmax.f32 %v828, %v1144
      %v1170 = vmax.f32 %v829, %v1145
      %v1171 = vmax.f32 %v830, %v1146
      %v1172 = vmax.f32 %v831, %v1147
      %v1173 = vmax.f32 %v832, %v1148
      %v1174 = vmax.f32 %v833, %v1149
      %v1175 = vmax.f32 %v834, %v1150
      %v1176 = vmax.f32 %v835, %v1151
      %v1177 = vmax.f32 %v836, %v1152
      %v1178 = vmax.f32 %v837, %v1153
      %v1179 = vmax.f32 %v838, %v1154
      %v1180 = vmax.f32 %v839, %v1155
      %v1181 = vmax.f32 %v840, %v1156
      %v1182 = vmax.f32 %v841, %v1157
      %v1183 = vmax.f32 %v842, %v1158
      %v1184 = vmax.f32 %v843, %v1159
      %v1185 = vmax.f32 %v844, %v1160
      %v1186 = vmax.f32 %v845, %v1161
      %v1187 = vmax.f32 %v846, %v1162
      %v1188 = vmax.f32 %v847, %v1163
      %v1189 = vmax.f32 %v848, %v1164
      %s1190 = scalar_lea.vmem %s165, 600
      %v1191 = vld [vmem:[%s1190] sm:$0xff]
      %v1192 = vld [vmem:[%s1190 + $0x8] sm:$0xff]
      %v1193 = vld [vmem:[%s1190 + $0x10] sm:$0xff]
      %v1194 = vld [vmem:[%s1190 + $0x18] sm:$0xff]
      %v1195 = vld [vmem:[%s1190 + $0x20] sm:$0xff]
      %v1196 = vld [vmem:[%s1190 + $0x28] sm:$0xff]
      %v1197 = vld [vmem:[%s1190 + $0x30] sm:$0xff]
      %v1198 = vld [vmem:[%s1190 + $0x38] sm:$0xff]
      %v1199 = vld [vmem:[%s1190 + $0x40] sm:$0xff]
      %v1200 = vld [vmem:[%s1190 + $0x48] sm:$0xff]
      %v1201 = vld [vmem:[%s1190 + $0x50] sm:$0xff]
      %v1202 = vld [vmem:[%s1190 + $0x58] sm:$0xff]
      %v1203 = vld [vmem:[%s1190 + $0x60] sm:$0xff]
      %v1204 = vld [vmem:[%s1190 + $0x68] sm:$0xff]
      %v1205 = vld [vmem:[%s1190 + $0x70] sm:$0xff]
      %v1206 = vld [vmem:[%s1190 + $0x78] sm:$0xff]
      %v1207 = vld [vmem:[%s1190 + $0x80] sm:$0xff]
      %v1208 = vld [vmem:[%s1190 + $0x88] sm:$0xff]
      %v1209 = vld [vmem:[%s1190 + $0x90] sm:$0xff]
      %v1210 = vld [vmem:[%s1190 + $0x98] sm:$0xff]
      %v1211 = vld [vmem:[%s1190 + $0xa0] sm:$0xff]
      %v1212 = vld [vmem:[%s1190 + $0xa8] sm:$0xff]
      %v1213 = vld [vmem:[%s1190 + $0xb0] sm:$0xff]
      %v1214 = vld [vmem:[%s1190 + $0xb8] sm:$0xff]
      %v1215 = vld [vmem:[%s1190 + $0xc0] sm:$0xf]
      %v1217 = vsel %vm213, %v1191, 0
      %v1220 = vsel %vm213, %v1192, 0
      %v1223 = vsel %vm213, %v1193, 0
      %v1226 = vsel %vm213, %v1194, 0
      %v1229 = vsel %vm213, %v1195, 0
      %v1232 = vsel %vm213, %v1196, 0
      %v1235 = vsel %vm213, %v1197, 0
      %v1238 = vsel %vm213, %v1198, 0
      %v1241 = vsel %vm213, %v1199, 0
      %v1244 = vsel %vm213, %v1200, 0
      %v1247 = vsel %vm213, %v1201, 0
      %v1250 = vsel %vm213, %v1202, 0
      %v1253 = vsel %vm213, %v1203, 0
      %v1256 = vsel %vm213, %v1204, 0
      %v1259 = vsel %vm213, %v1205, 0
      %v1262 = vsel %vm213, %v1206, 0
      %v1265 = vsel %vm213, %v1207, 0
      %v1268 = vsel %vm213, %v1208, 0
      %v1271 = vsel %vm213, %v1209, 0
      %v1274 = vsel %vm213, %v1210, 0
      %v1277 = vsel %vm213, %v1211, 0
      %v1280 = vsel %vm213, %v1212, 0
      %v1283 = vsel %vm213, %v1213, 0
      %v1286 = vsel %vm213, %v1214, 0
      %v1289 = vsel %vm213, %v1215, 0
      %1291 = vmatprep.subr.mxu0 0.0
      %1292 = vmatpush1.msra.mxu0 %v171
      %1293 = vmatprep.subr.mxu0 0.0
      %1294 = vmatpush1.msra.mxu0 %v172
      %1295 = vmatprep.subr.mxu0 0.0
      %1296 = vmatpush1.msra.mxu0 %v173
      %1297 = vmatprep.subr.mxu0 0.0
      %1298 = vmatpush1.msra.mxu0 %v174
      %1299 = vmatprep.subr.mxu0 0.0
      %1300 = vmatpush1.msra.mxu0 %v175
      %1301 = vmatprep.subr.mxu0 0.0
      %1302 = vmatpush1.msra.mxu0 %v176
      %1303 = vmatprep.subr.mxu0 0.0
      %1304 = vmatpush1.msra.mxu0 %v177
      %1305 = vmatprep.subr.mxu0 0.0
      %1306 = vmatpush1.msra.mxu0 %v178
      %1307 = vmatprep.subr.mxu0 0.0
      %1308 = vmatpush1.msra.mxu0 %v179
      %1309 = vmatprep.subr.mxu0 0.0
      %1310 = vmatpush1.msra.mxu0 %v291
      %1311 = vmatprep.subr.mxu0 0.0
      %1312 = vmatpush1.msra.mxu0 0.0
      %1313 = vmatprep.subr.mxu0 0.0
      %1314 = vmatpush1.msra.mxu0 0.0
      %1315 = vmatprep.subr.mxu0 0.0
      %1316 = vmatpush1.msra.mxu0 0.0
      %1317 = vmatprep.subr.mxu0 0.0
      %1318 = vmatpush1.msra.mxu0 0.0
      %1319 = vmatprep.subr.mxu0 0.0
      %1320 = vmatpush1.msra.mxu0 0.0
      %1321 = vmatprep.subr.mxu0 0.0
      %1322 = vmatpush1.msra.mxu0 0.0
      %1323 = vmatprep.subr.mxu0 0.0
      %1324 = vmatpush1.msra.mxu0 0.0
      %1325 = vmatprep.subr.mxu0 0.0
      %1326 = vmatpush1.msra.mxu0 0.0
      %1327 = vmatprep.subr.mxu0 0.0
      %1328 = vmatpush1.msra.mxu0 0.0
      %1329 = vmatprep.subr.mxu0 0.0
      %1330 = vmatpush1.msra.mxu0 0.0
      %1331 = vmatprep.subr.mxu0 0.0
      %1332 = vmatpush1.msra.mxu0 0.0
      %1333 = vmatprep.subr.mxu0 0.0
      %1334 = vmatpush1.msra.mxu0 0.0
      %1335 = vmatprep.subr.mxu0 0.0
      %1336 = vmatpush1.msra.mxu0 0.0
      %1337 = vmatprep.subr.mxu0 0.0
      %1338 = vmatpush1.msra.mxu0 0.0
      %1339 = vmatprep.subr.mxu0 0.0
      %1340 = vmatpush1.msra.mxu0 0.0
      %1341 = vmatprep.subr.mxu0 0.0
      %1342 = vmatpush1.msra.mxu0 0.0
      %1343 = vmatprep.subr.mxu0 0.0
      %1344 = vmatpush1.msra.mxu0 0.0
      %1345 = vmatprep.subr.mxu0 0.0
      %1346 = vmatpush1.msra.mxu0 0.0
      %1347 = vmatprep.subr.mxu0 0.0
      %1348 = vmatpush1.msra.mxu0 0.0
      %1349 = vmatprep.subr.mxu0 0.0
      %1350 = vmatpush1.msra.mxu0 0.0
      %1351 = vmatprep.subr.mxu0 0.0
      %1352 = vmatpush1.msra.mxu0 0.0
      %1353 = vmatprep.subr.mxu0 0.0
      %1354 = vmatpush1.msra.mxu0 0.0
      %1355 = vmatprep.mubr.f32.mxu0 0.0
      %1356 = vmatmul.mubr.f32.gmra.mrb[0].mxu0 %v1217
      %v1357 = vpop.f32.mrb[0].mxu0
      %v1358 = vadd.f32 %v211, %v1357
      %v1359 = vpop.f32.mrb[0].mxu0
      %1360 = vmatprep.mubr.f32.mxu0 0.0
      %1361 = vmatmul.mubr.f32.gmra.mrb[0].mxu0 %v1220
      %v1362 = vpop.f32.mrb[0].mxu0
      %v1363 = vadd.f32 %v211, %v1362
      %v1364 = vpop.f32.mrb[0].mxu0
      %1365 = vmatprep.mubr.f32.mxu0 0.0
      %1366 = vmatmul.mubr.f32.gmra.mrb[0].mxu0 %v1223
      %v1367 = vpop.f32.mrb[0].mxu0
      %v1368 = vadd.f32 %v211, %v1367
      %v1369 = vpop.f32.mrb[0].mxu0
      %1370 = vmatprep.mubr.f32.mxu0 0.0
      %1371 = vmatmul.mubr.f32.gmra.mrb[0].mxu0 %v1226
      %v1372 = vpop.f32.mrb[0].mxu0
      %v1373 = vadd.f32 %v211, %v1372
      %v1374 = vpop.f32.mrb[0].mxu0
      %1375 = vmatprep.mubr.f32.mxu0 0.0
      %1376 = vmatmul.mubr.f32.gmra.mrb[0].mxu0 %v1229
      %v1377 = vpop.f32.mrb[0].mxu0
      %v1378 = vadd.f32 %v211, %v1377
      %v1379 = vpop.f32.mrb[0].mxu0
      %1380 = vmatprep.mubr.f32.mxu0 0.0
      %1381 = vmatmul.mubr.f32.gmra.mrb[0].mxu0 %v1232
      %v1382 = vpop.f32.mrb[0].mxu0
      %v1383 = vadd.f32 %v211, %v1382
      %v1384 = vpop.f32.mrb[0].mxu0
      %1385 = vmatprep.mubr.f32.mxu0 0.0
      %1386 = vmatmul.mubr.f32.gmra.mrb[0].mxu0 %v1235
      %v1387 = vpop.f32.mrb[0].mxu0
      %v1388 = vadd.f32 %v211, %v1387
      %v1389 = vpop.f32.mrb[0].mxu0
      %1390 = vmatprep.mubr.f32.mxu0 0.0
      %1391 = vmatmul.mubr.f32.gmra.mrb[0].mxu0 %v1238
      %v1392 = vpop.f32.mrb[0].mxu0
      %v1393 = vadd.f32 %v211, %v1392
      %v1394 = vpop.f32.mrb[0].mxu0
      %1395 = vmatprep.mubr.f32.mxu0 0.0
      %1396 = vmatmul.mubr.f32.gmra.mrb[0].mxu0 %v1241
      %v1397 = vpop.f32.mrb[0].mxu0
      %v1398 = vadd.f32 %v211, %v1397
      %v1399 = vpop.f32.mrb[0].mxu0
      %1400 = vmatprep.mubr.f32.mxu0 0.0
      %1401 = vmatmul.mubr.f32.gmra.mrb[0].mxu0 %v1244
      %v1402 = vpop.f32.mrb[0].mxu0
      %v1403 = vadd.f32 %v211, %v1402
      %v1404 = vpop.f32.mrb[0].mxu0
      %1405 = vmatprep.mubr.f32.mxu0 0.0
      %1406 = vmatmul.mubr.f32.gmra.mrb[0].mxu0 %v1247
      %v1407 = vpop.f32.mrb[0].mxu0
      %v1408 = vadd.f32 %v211, %v1407
      %v1409 = vpop.f32.mrb[0].mxu0
      %1410 = vmatprep.mubr.f32.mxu0 0.0
      %1411 = vmatmul.mubr.f32.gmra.mrb[0].mxu0 %v1250
      %v1412 = vpop.f32.mrb[0].mxu0
      %v1413 = vadd.f32 %v211, %v1412
      %v1414 = vpop.f32.mrb[0].mxu0
      %1415 = vmatprep.mubr.f32.mxu0 0.0
      %1416 = vmatmul.mubr.f32.gmra.mrb[0].mxu0 %v1253
      %v1417 = vpop.f32.mrb[0].mxu0
      %v1418 = vadd.f32 %v211, %v1417
      %v1419 = vpop.f32.mrb[0].mxu0
      %1420 = vmatprep.mubr.f32.mxu0 0.0
      %1421 = vmatmul.mubr.f32.gmra.mrb[0].mxu0 %v1256
      %v1422 = vpop.f32.mrb[0].mxu0
      %v1423 = vadd.f32 %v211, %v1422
      %v1424 = vpop.f32.mrb[0].mxu0
      %1425 = vmatprep.mubr.f32.mxu0 0.0
      %1426 = vmatmul.mubr.f32.gmra.mrb[0].mxu0 %v1259
      %v1427 = vpop.f32.mrb[0].mxu0
      %v1428 = vadd.f32 %v211, %v1427
      %v1429 = vpop.f32.mrb[0].mxu0
      %1430 = vmatprep.mubr.f32.mxu0 0.0
      %1431 = vmatmul.mubr.f32.gmra.mrb[0].mxu0 %v1262
      %v1432 = vpop.f32.mrb[0].mxu0
      %v1433 = vadd.f32 %v211, %v1432
      %v1434 = vpop.f32.mrb[0].mxu0
      %1435 = vmatprep.mubr.f32.mxu0 0.0
      %1436 = vmatmul.mubr.f32.gmra.mrb[0].mxu0 %v1265
      %v1437 = vpop.f32.mrb[0].mxu0
      %v1438 = vadd.f32 %v211, %v1437
      %v1439 = vpop.f32.mrb[0].mxu0
      %1440 = vmatprep.mubr.f32.mxu0 0.0
      %1441 = vmatmul.mubr.f32.gmra.mrb[0].mxu0 %v1268
      %v1442 = vpop.f32.mrb[0].mxu0
      %v1443 = vadd.f32 %v211, %v1442
      %v1444 = vpop.f32.mrb[0].mxu0
      %1445 = vmatprep.mubr.f32.mxu0 0.0
      %1446 = vmatmul.mubr.f32.gmra.mrb[0].mxu0 %v1271
      %v1447 = vpop.f32.mrb[0].mxu0
      %v1448 = vadd.f32 %v211, %v1447
      %v1449 = vpop.f32.mrb[0].mxu0
      %1450 = vmatprep.mubr.f32.mxu0 0.0
      %1451 = vmatmul.mubr.f32.gmra.mrb[0].mxu0 %v1274
      %v1452 = vpop.f32.mrb[0].mxu0
      %v1453 = vadd.f32 %v211, %v1452
      %v1454 = vpop.f32.mrb[0].mxu0
      %1455 = vmatprep.mubr.f32.mxu0 0.0
      %1456 = vmatmul.mubr.f32.gmra.mrb[0].mxu0 %v1277
      %v1457 = vpop.f32.mrb[0].mxu0
      %v1458 = vadd.f32 %v211, %v1457
      %v1459 = vpop.f32.mrb[0].mxu0
      %1460 = vmatprep.mubr.f32.mxu0 0.0
      %1461 = vmatmul.mubr.f32.gmra.mrb[0].mxu0 %v1280
      %v1462 = vpop.f32.mrb[0].mxu0
      %v1463 = vadd.f32 %v211, %v1462
      %v1464 = vpop.f32.mrb[0].mxu0
      %1465 = vmatprep.mubr.f32.mxu0 0.0
      %1466 = vmatmul.mubr.f32.gmra.mrb[0].mxu0 %v1283
      %v1467 = vpop.f32.mrb[0].mxu0
      %v1468 = vadd.f32 %v211, %v1467
      %v1469 = vpop.f32.mrb[0].mxu0
      %1470 = vmatprep.mubr.f32.mxu0 0.0
      %1471 = vmatmul.mubr.f32.gmra.mrb[0].mxu0 %v1286
      %v1472 = vpop.f32.mrb[0].mxu0
      %v1473 = vadd.f32 %v211, %v1472
      %v1474 = vpop.f32.mrb[0].mxu0
      %1475 = vmatprep.mubr.f32.mxu0 0.0
      %1476 = vmatmul.mubr.f32.gmra.mrb[0].mxu0 %v1289
      %v1477 = vpop.f32.mrb[0].mxu0
      %v1478 = vadd.f32 %v211, %v1477
      %v1479 = vpop.f32.mrb[0].mxu0
      %1480 = vdwg.mxu0
      %v1481 = vmax.f32 %v1358, 0.0
      %v1482 = vmax.f32 %v1363, 0.0
      %v1483 = vmax.f32 %v1368, 0.0
      %v1484 = vmax.f32 %v1373, 0.0
      %v1485 = vmax.f32 %v1378, 0.0
      %v1486 = vmax.f32 %v1383, 0.0
      %v1487 = vmax.f32 %v1388, 0.0
      %v1488 = vmax.f32 %v1393, 0.0
      %v1489 = vmax.f32 %v1398, 0.0
      %v1490 = vmax.f32 %v1403, 0.0
      %v1491 = vmax.f32 %v1408, 0.0
      %v1492 = vmax.f32 %v1413, 0.0
      %v1493 = vmax.f32 %v1418, 0.0
      %v1494 = vmax.f32 %v1423, 0.0
      %v1495 = vmax.f32 %v1428, 0.0
      %v1496 = vmax.f32 %v1433, 0.0
      %v1497 = vmax.f32 %v1438, 0.0
      %v1498 = vmax.f32 %v1443, 0.0
      %v1499 = vmax.f32 %v1448, 0.0
      %v1500 = vmax.f32 %v1453, 0.0
      %v1501 = vmax.f32 %v1458, 0.0
      %v1502 = vmax.f32 %v1463, 0.0
      %v1503 = vmax.f32 %v1468, 0.0
      %v1504 = vmax.f32 %v1473, 0.0
      %v1505 = vmax.f32 %v1478, 0.0
      %v1506 = vmax.f32 %v1165, %v1481
      %v1507 = vmax.f32 %v1166, %v1482
      %v1508 = vmax.f32 %v1167, %v1483
      %v1509 = vmax.f32 %v1168, %v1484
      %v1510 = vmax.f32 %v1169, %v1485
      %v1511 = vmax.f32 %v1170, %v1486
      %v1512 = vmax.f32 %v1171, %v1487
      %v1513 = vmax.f32 %v1172, %v1488
      %v1514 = vmax.f32 %v1173, %v1489
      %v1515 = vmax.f32 %v1174, %v1490
      %v1516 = vmax.f32 %v1175, %v1491
      %v1517 = vmax.f32 %v1176, %v1492
      %v1518 = vmax.f32 %v1177, %v1493
      %v1519 = vmax.f32 %v1178, %v1494
      %v1520 = vmax.f32 %v1179, %v1495
      %v1521 = vmax.f32 %v1180, %v1496
      %v1522 = vmax.f32 %v1181, %v1497
      %v1523 = vmax.f32 %v1182, %v1498
      %v1524 = vmax.f32 %v1183, %v1499
      %v1525 = vmax.f32 %v1184, %v1500
      %v1526 = vmax.f32 %v1185, %v1501
      %v1527 = vmax.f32 %v1186, %v1502
      %v1528 = vmax.f32 %v1187, %v1503
      %v1529 = vmax.f32 %v1188, %v1504
      %v1530 = vmax.f32 %v1189, %v1505
      %vm1531 = vcmask 64512
      %1532 = vst.msk [vmem:[%s170] sm:$0xff] %vm1531, %v1506
      %1533 = vst.msk [vmem:[%s170 + $0x8] sm:$0xff] %vm1531, %v1507
      %1534 = vst.msk [vmem:[%s170 + $0x10] sm:$0xff] %vm1531, %v1508
      %1535 = vst.msk [vmem:[%s170 + $0x18] sm:$0xff] %vm1531, %v1509
      %1536 = vst.msk [vmem:[%s170 + $0x20] sm:$0xff] %vm1531, %v1510
      %1537 = vst.msk [vmem:[%s170 + $0x28] sm:$0xff] %vm1531, %v1511
      %1538 = vst.msk [vmem:[%s170 + $0x30] sm:$0xff] %vm1531, %v1512
      %1539 = vst.msk [vmem:[%s170 + $0x38] sm:$0xff] %vm1531, %v1513
      %1540 = vst.msk [vmem:[%s170 + $0x40] sm:$0xff] %vm1531, %v1514
      %1541 = vst.msk [vmem:[%s170 + $0x48] sm:$0xff] %vm1531, %v1515
      %1542 = vst.msk [vmem:[%s170 + $0x50] sm:$0xff] %vm1531, %v1516
      %1543 = vst.msk [vmem:[%s170 + $0x58] sm:$0xff] %vm1531, %v1517
      %1544 = vst.msk [vmem:[%s170 + $0x60] sm:$0xff] %vm1531, %v1518
      %1545 = vst.msk [vmem:[%s170 + $0x68] sm:$0xff] %vm1531, %v1519
      %1546 = vst.msk [vmem:[%s170 + $0x70] sm:$0xff] %vm1531, %v1520
      %1547 = vst.msk [vmem:[%s170 + $0x78] sm:$0xff] %vm1531, %v1521
      %1548 = vst.msk [vmem:[%s170 + $0x80] sm:$0xff] %vm1531, %v1522
      %1549 = vst.msk [vmem:[%s170 + $0x88] sm:$0xff] %vm1531, %v1523
      %1550 = vst.msk [vmem:[%s170 + $0x90] sm:$0xff] %vm1531, %v1524
      %1551 = vst.msk [vmem:[%s170 + $0x98] sm:$0xff] %vm1531, %v1525
      %1552 = vst.msk [vmem:[%s170 + $0xa0] sm:$0xff] %vm1531, %v1526
      %1553 = vst.msk [vmem:[%s170 + $0xa8] sm:$0xff] %vm1531, %v1527
      %1554 = vst.msk [vmem:[%s170 + $0xb0] sm:$0xff] %vm1531, %v1528
      %1555 = vst.msk [vmem:[%s170 + $0xb8] sm:$0xff] %vm1531, %v1529
      %vm1556 = vcmask 60416
      %1557 = vst.msk [vmem:[%s170 + $0xc0] sm:$0xf] %vm1556, %v1530
      %p1558 = scmp.lt.s32.totalorder %s14, 1
      %s1559 = scalar_select %p1558, %s14, 1
      %s1560 = smul.addr %s1559, 25
      %s1561 = smul.addr %s1560, 8
      %s1562 = scalar_lea.vmem %s3, %s1561
      // Predicated region
      $region33: #{lenet100_forward.3} parent=31 // pred_check
        %p1563 = pneg %p100
      $region34: #{lenet100_forward.3} parent=31 // pred_check_branch
        %1565 = sbr.rel (%p1563) target = $region36
      $region35: #{lenet100_forward.3} parent=31 // pred_region
        _
      $region36: #{lenet100_forward.3} parent=31 // pred_fallthru
        _
    $region32: #{lenet100_forward.3} parent=5 // pred_fallthru
      _
    %p1566 = scmp.le.s32.totalorder 2, %s9
    // Predicated region
    $region37: #{lenet100_forward.3} parent=5 // pred_check
      %p1567 = pneg %p1566
    $region38: #{lenet100_forward.3} parent=5 // pred_check_branch
      %1569 = sbr.rel (%p1567) target = $region40
    $region39: #{lenet100_forward.3} parent=5 // pred_region
      %s1570 = ssub.s32 %s9, 2
      // Predicated region
      $region41: #{lenet100_forward.3} parent=39 // pred_check
        %p1571 = pneg %p106
      $region42: #{lenet100_forward.3} parent=39 // pred_check_branch
        %1573 = sbr.rel (%p1571) target = $region44
      $region43: #{lenet100_forward.3} parent=39 // pred_region
        %p1574 = scmp.lt.s32.totalorder %s15, 1
        %s1575 = scalar_select %p1574, %s15, 1
        %s1576 = smul.addr %s1575, 25
        %s1577 = smul.addr %s1576, 8
        %s1578 = scalar_lea.vmem %s3, %s1577
      $region44: #{lenet100_forward.3} parent=39 // pred_fallthru
        _
    $region40: #{lenet100_forward.3} parent=5 // pred_fallthru
      _
  $region6: #{lenet100_forward.3} parent=0 // loop_footer
    %s13 = sadd.s32 1, %s9
  $region7: #{lenet100_forward.3} parent=0 // loop_footer_branch
    %8 = sbr.rel target = $region3
  $region8: #{lenet100_forward.3} parent=0 // loop_exit
    _

// kernel: lenet100_forward.4
$region0: #{lenet100_forward.4}
  #allocation0 [shape = 'u32[]', space=smem, size = 0x4, offset = 0x4, fixed_abs, tag = 'smem constant byte address 0x4 - core index']
  #allocation1 [shape = 'u32[144,128]{1,0:T(1,128)}', space=vmem, size = 0x12000, scoped, tag = 'internal scratch']
  %s0 = inlined_call_operand.vmem [shape: f32[2,4,25,200], index: 0, kind: input, shape index: {}]
  %s1 = inlined_call_operand.vmem [shape: f32[200,16], index: 1, kind: input, shape index: {}]
  %s2 = inlined_call_operand.vmem [shape: f32[1,16], index: 2, kind: input, shape index: {}]
  %s3 = inlined_call_operand.vmem [shape: f32[2,25,16], index: 3, kind: output, shape index: {}]
  %s4 = sld [smem:[#allocation0]]
  $region45: #{lenet100_forward.4} parent=0
    _
  %s6 = ssub.s32 1, %s4
  %s7 = scalar_select 0, %s6, %s4
  loop: start=0, step=1, limit=4
  $region2: #{lenet100_forward.4} parent=0 // loop_pre_header
    _
  $region3: #{lenet100_forward.4} parent=0 // loop_header
    %s9 = sphi 0, %s13
    %p10 = scmp.ge.s32.totalorder %s9, 4
    %s19 = sphi 0, %s21
    %s22 = sphi 0, %s19
    %s23 = sphi 0, %s22
    %s39 = sphi 0, %s23
    %s43 = sphi 0, %s43
    %s45 = sphi 0, %s43
    %s46 = sphi 0, %s45
    %s60 = sphi 0, %s46
    %s64 = sphi 0, %s64
    %s66 = sphi 0, %s64
    %s67 = sphi 0, %s66
    %s81 = sphi 0, %s67
    %s87 = sphi 0, %s89
    %s90 = sphi 0, %s87
    %s91 = sphi 0, %s90
    %s107 = sphi 0, %s91
  $region4: #{lenet100_forward.4} parent=0 // loop_header_branch
    %12 = sbr.rel (%p10) target = $region8
  $region5: #{lenet100_forward.4} parent=0 // loop_body
    %s14 = ssub.s32 %s9, 1
    %s15 = ssub.s32 %s9, 2
    %s16 = sadd.s32 %s9, 1
    %s17 = ssub.s32 %s9, %s16
    %p18 = scmp.eq.s32.totalorder %s17, 0
    %s20 = sadd.s32 %s19, 1
    %s21 = scalar_select %p18, %s19, %s20
    %p24 = pneg %p18
    %p25 = scmp.eq.s32.totalorder %s9, 1
    %p26 = por %p24, %p25
    %p27 = scmp.ne.s32.totalorder %s19, %s22
    %p28 = scmp.eq.s32.totalorder %s9, 0
    %p29 = por %p27, %p28
    %p30 = scmp.ne.s32.totalorder %s19, %s22
    %p31 = scmp.eq.s32.totalorder %s14, 1
    %p32 = por %p30, %p31
    %p33 = scmp.ne.s32.totalorder %s22, %s23
    %p34 = scmp.eq.s32.totalorder %s14, 0
    %p35 = por %p33, %p34
    %p36 = scmp.ne.s32.totalorder %s22, %s23
    %p37 = scmp.eq.s32.totalorder %s15, 1
    %p38 = por %p36, %p37
    %p40 = scmp.ne.s32.totalorder %s23, %s39
    %p41 = scmp.eq.s32.totalorder %s15, 0
    %p42 = por %p40, %p41
    %s44 = sadd.s32 %s43, 1
    %p47 = scmp.eq.s32.totalorder %s9, 1
    %p48 = scmp.ne.s32.totalorder %s43, %s45
    %p49 = scmp.eq.s32.totalorder %s9, 0
    %p50 = por %p48, %p49
    %p51 = scmp.ne.s32.totalorder %s43, %s45
    %p52 = scmp.eq.s32.totalorder %s14, 1
    %p53 = por %p51, %p52
    %p54 = scmp.ne.s32.totalorder %s45, %s46
    %p55 = scmp.eq.s32.totalorder %s14, 0
    %p56 = por %p54, %p55
    %p57 = scmp.ne.s32.totalorder %s45, %s46
    %p58 = scmp.eq.s32.totalorder %s15, 1
    %p59 = por %p57, %p58
    %p61 = scmp.ne.s32.totalorder %s46, %s60
    %p62 = scmp.eq.s32.totalorder %s15, 0
    %p63 = por %p61, %p62
    %s65 = sadd.s32 %s64, 1
    %p68 = scmp.eq.s32.totalorder %s9, 1
    %p69 = scmp.ne.s32.totalorder %s64, %s66
    %p70 = scmp.eq.s32.totalorder %s9, 0
    %p71 = por %p69, %p70
    %p72 = scmp.ne.s32.totalorder %s64, %s66
    %p73 = scmp.eq.s32.totalorder %s14, 1
    %p74 = por %p72, %p73
    %p75 = scmp.ne.s32.totalorder %s66, %s67
    %p76 = scmp.eq.s32.totalorder %s14, 0
    %p77 = por %p75, %p76
    %p78 = scmp.ne.s32.totalorder %s66, %s67
    %p79 = scmp.eq.s32.totalorder %s15, 1
    %p80 = por %p78, %p79
    %p82 = scmp.ne.s32.totalorder %s67, %s81
    %p83 = scmp.eq.s32.totalorder %s15, 0
    %p84 = por %p82, %p83
    %s85 = ssub.s32 %s9, %s16
    %p86 = scmp.eq.s32.totalorder %s85, 0
    %s88 = sadd.s32 %s87, 1
    %s89 = scalar_select %p86, %s87, %s88
    %p92 = pneg %p86
    %p93 = scmp.eq.s32.totalorder %s9, 1
    %p94 = por %p92, %p93
    %p95 = scmp.ne.s32.totalorder %s87, %s90
    %p96 = scmp.eq.s32.totalorder %s9, 0
    %p97 = por %p95, %p96
    %p98 = scmp.ne.s32.totalorder %s87, %s90
    %p99 = scmp.eq.s32.totalorder %s14, 1
    %p100 = por %p98, %p99
    %p101 = scmp.ne.s32.totalorder %s90, %s91
    %p102 = scmp.eq.s32.totalorder %s14, 0
    %p103 = por %p101, %p102
    %p104 = scmp.ne.s32.totalorder %s90, %s91
    %p105 = scmp.eq.s32.totalorder %s15, 1
    %p106 = por %p104, %p105
    %p108 = scmp.ne.s32.totalorder %s91, %s107
    %p109 = scmp.eq.s32.totalorder %s15, 0
    %p110 = por %p108, %p109
    %p111 = scmp.le.s32.totalorder 1, %s9
    %p112 = scmp.lt.s32.totalorder %s9, 3
    %p113 = pnand %p111, %p112
    %p114 = pneg %p113
    // Predicated region
    $region9: #{lenet100_forward.4} parent=5 // pred_check
      _
    $region10: #{lenet100_forward.4} parent=5 // pred_check_branch
      %116 = sbr.rel (%p113) target = $region12
    $region11: #{lenet100_forward.4} parent=5 // pred_region
      %s117 = ssub.s32 %s9, 1
      // Predicated region
      $region13: #{lenet100_forward.4} parent=11 // pred_check
        %p118 = pneg %p56
      $region14: #{lenet100_forward.4} parent=11 // pred_check_branch
        %120 = sbr.rel (%p118) target = $region16
      $region15: #{lenet100_forward.4} parent=11 // pred_region
        _
      $region16: #{lenet100_forward.4} parent=11 // pred_fallthru
        _
      // Predicated region
      $region17: #{lenet100_forward.4} parent=11 // pred_check
        %p121 = pneg %p77
      $region18: #{lenet100_forward.4} parent=11 // pred_check_branch
        %123 = sbr.rel (%p121) target = $region20
      $region19: #{lenet100_forward.4} parent=11 // pred_region
        _
      $region20: #{lenet100_forward.4} parent=11 // pred_fallthru
        _
    $region12: #{lenet100_forward.4} parent=5 // pred_fallthru
      _
    %p124 = scmp.lt.s32.totalorder %s9, 2
    // Predicated region
    $region21: #{lenet100_forward.4} parent=5 // pred_check
      %p125 = pneg %p124
    $region22: #{lenet100_forward.4} parent=5 // pred_check_branch
      %127 = sbr.rel (%p125) target = $region24
    $region23: #{lenet100_forward.4} parent=5 // pred_region
      // Predicated region
      $region25: #{lenet100_forward.4} parent=23 // pred_check
        %p128 = pneg %p29
      $region26: #{lenet100_forward.4} parent=23 // pred_check_branch
        %130 = sbr.rel (%p128) target = $region28
      $region27: #{lenet100_forward.4} parent=23 // pred_region
        %p131 = scmp.lt.s32.totalorder %s9, 1
        %s132 = scalar_select %p131, %s9, 1
        %s133 = smul.addr %s132, 32
        %s134 = smul.addr %s133, 8
        %s135 = scalar_lea.vmem %s0, %s134
      $region28: #{lenet100_forward.4} parent=23 // pred_fallthru
        _
    $region24: #{lenet100_forward.4} parent=5 // pred_fallthru
      _
    %p136 = scmp.le.s32.totalorder 1, %s9
    %p137 = scmp.lt.s32.totalorder %s9, 3
    %p138 = pnand %p136, %p137
    %p139 = pneg %p138
    // Predicated region
    $region29: #{lenet100_forward.4} parent=5 // pred_check
      _
    $region30: #{lenet100_forward.4} parent=5 // pred_check_branch
      %141 = sbr.rel (%p138) target = $region32
    $region31: #{lenet100_forward.4} parent=5 // pred_region
      %s142 = ssub.s32 %s9, 1
      %p143 = scmp.lt.s32.totalorder %s14, 1
      %s144 = scalar_select %p143, %s14, 1
      %s145 = smul.addr %s144, 32
      %s146 = smul.addr %s145, 8
      %s147 = scalar_lea.vmem %s0, %s146
      %p148 = pneg %p35
      %p149 = pneg %p32
      %p150 = pneg %p56
      %p151 = pneg %p53
      %p152 = pneg %p77
      %p153 = pneg %p74
      %p154 = pneg %p103
      %p155 = pneg %p100
      %p156 = scmp.lt.s32.totalorder %s14, 1
      %s157 = scalar_select %p156, %s14, 1
      %s158 = smul.addr %s157, 4
      %s159 = smul.addr %s158, 8
      %s160 = scalar_lea.vmem %s3, %s159
      %p161 = scmp.lt.s32.totalorder %s14, 1
      %s162 = scalar_select %p161, %s14, 1
      %s163 = smul.addr %s162, 32
      %s164 = smul.addr %s163, 8
      %s165 = scalar_lea.vmem %s0, %s164
      %p166 = scmp.lt.s32.totalorder %s14, 1
      %s167 = scalar_select %p166, %s14, 1
      %s168 = smul.addr %s167, 4
      %s169 = smul.addr %s168, 8
      %s170 = scalar_lea.vmem %s3, %s169
      %v171 = vld [vmem:[%s1] sm:$0xff]
      %v172 = vld [vmem:[%s1 + $0x8] sm:$0xff]
      %v173 = vld [vmem:[%s1 + $0x10] sm:$0xff]
      %v174 = vld [vmem:[%s1 + $0x18] sm:$0xff]
      %v175 = vld [vmem:[%s1 + $0x20] sm:$0xff]
      %v176 = vld [vmem:[%s1 + $0x28] sm:$0xff]
      %v177 = vld [vmem:[%s1 + $0x30] sm:$0xff]
      %v178 = vld [vmem:[%s1 + $0x38] sm:$0xff]
      %v179 = vld [vmem:[%s1 + $0x40] sm:$0xff]
      %v180 = vld [vmem:[%s1 + $0x48] sm:$0xff]
      %v181 = vld [vmem:[%s1 + $0x50] sm:$0xff]
      %v182 = vld [vmem:[%s1 + $0x58] sm:$0xff]
      %v183 = vld [vmem:[%s1 + $0x60] sm:$0xff]
      %v184 = vld [vmem:[%s1 + $0x68] sm:$0xff]
      %v185 = vld [vmem:[%s1 + $0x70] sm:$0xff]
      %v186 = vld [vmem:[%s1 + $0x78] sm:$0xff]
      %v187 = vld [vmem:[%s1 + $0x80] sm:$0xff]
      %v188 = vld [vmem:[%s1 + $0x88] sm:$0xff]
      %v189 = vld [vmem:[%s1 + $0x90] sm:$0xff]
      %v190 = vld [vmem:[%s1 + $0x98] sm:$0xff]
      %v191 = vld [vmem:[%s1 + $0xa0] sm:$0xff]
      %v192 = vld [vmem:[%s1 + $0xa8] sm:$0xff]
      %v193 = vld [vmem:[%s1 + $0xb0] sm:$0xff]
      %v194 = vld [vmem:[%s1 + $0xb8] sm:$0xff]
      %v195 = vld [vmem:[%s1 + $0xc0] sm:$0xff]
      %v196 = vld [vmem:[%s2] sm:$0x1]
      %v197 = vld [vmem:[%s165] sm:$0xff]
      %v198 = vld [vmem:[%s165 + $0x8] sm:$0xff]
      %v199 = vld [vmem:[%s165 + $0x10] sm:$0xff]
      %v200 = vld [vmem:[%s165 + $0x18] sm:$0xff]
      %v201 = vld [vmem:[%s165 + $0x20] sm:$0xff]
      %v202 = vld [vmem:[%s165 + $0x28] sm:$0xff]
      %v203 = vld [vmem:[%s165 + $0x30] sm:$0x1]
      %v204 = vld [vmem:[%s165 + $0x38] sm:$0x1]
      %v206 = vlaneseq
      %v207 = vshrl.u32 %v206, 7
      %v208 = vsub.s32 0, %v207
      %v209 = vrot.slane %v196, %v208
      %vm211 = vcmask 588800
      %v213 = vsel %vm211, %v198, 0
      %v216 = vsel %vm211, %v200, 0
      %v219 = vsel %vm211, %v202, 0
      %v222 = vsel %vm211, %v204, 0
      %224 = vmatprep.subr.mxu0 0.0
      %225 = vmatpush1.msra.mxu0 %v171
      %226 = vmatprep.subr.mxu0 0.0
      %227 = vmatpush1.msra.mxu0 %v172
      %228 = vmatprep.subr.mxu0 0.0
      %229 = vmatpush1.msra.mxu0 %v173
      %230 = vmatprep.subr.mxu0 0.0
      %231 = vmatpush1.msra.mxu0 %v174
      %232 = vmatprep.subr.mxu0 0.0
      %233 = vmatpush1.msra.mxu0 %v175
      %234 = vmatprep.subr.mxu0 0.0
      %235 = vmatpush1.msra.mxu0 %v176
      %236 = vmatprep.subr.mxu0 0.0
      %237 = vmatpush1.msra.mxu0 %v177
      %238 = vmatprep.subr.mxu0 0.0
      %239 = vmatpush1.msra.mxu0 %v178
      %240 = vmatprep.subr.mxu0 0.0
      %241 = vmatpush1.msra.mxu0 %v179
      %242 = vmatprep.subr.mxu0 0.0
      %243 = vmatpush1.msra.mxu0 %v180
      %244 = vmatprep.subr.mxu0 0.0
      %245 = vmatpush1.msra.mxu0 %v181
      %246 = vmatprep.subr.mxu0 0.0
      %247 = vmatpush1.msra.mxu0 %v182
      %248 = vmatprep.subr.mxu0 0.0
      %249 = vmatpush1.msra.mxu0 %v183
      %250 = vmatprep.subr.mxu0 0.0
      %251 = vmatpush1.msra.mxu0 %v184
      %252 = vmatprep.subr.mxu0 0.0
      %253 = vmatpush1.msra.mxu0 %v185
      %254 = vmatprep.subr.mxu0 0.0
      %255 = vmatpush1.msra.mxu0 %v186
      %256 = vmatprep.subr.mxu0 0.0
      %257 = vmatpush1.msra.mxu0 %v187
      %258 = vmatprep.subr.mxu0 0.0
      %259 = vmatpush1.msra.mxu0 %v188
      %260 = vmatprep.subr.mxu0 0.0
      %261 = vmatpush1.msra.mxu0 %v189
      %262 = vmatprep.subr.mxu0 0.0
      %263 = vmatpush1.msra.mxu0 %v190
      %264 = vmatprep.subr.mxu0 0.0
      %265 = vmatpush1.msra.mxu0 %v191
      %266 = vmatprep.subr.mxu0 0.0
      %267 = vmatpush1.msra.mxu0 %v192
      %268 = vmatprep.subr.mxu0 0.0
      %269 = vmatpush1.msra.mxu0 %v193
      %270 = vmatprep.subr.mxu0 0.0
      %271 = vmatpush1.msra.mxu0 %v194
      %272 = vmatprep.subr.mxu0 0.0
      %273 = vmatpush1.msra.mxu0 %v195
      %274 = vmatprep.subr.mxu0 0.0
      %275 = vmatpush1.msra.mxu0 0.0
      %276 = vmatprep.subr.mxu0 0.0
      %277 = vmatpush1.msra.mxu0 0.0
      %278 = vmatprep.subr.mxu0 0.0
      %279 = vmatpush1.msra.mxu0 0.0
      %280 = vmatprep.subr.mxu0 0.0
      %281 = vmatpush1.msra.mxu0 0.0
      %282 = vmatprep.subr.mxu0 0.0
      %283 = vmatpush1.msra.mxu0 0.0
      %284 = vmatprep.subr.mxu0 0.0
      %285 = vmatpush1.msra.mxu0 0.0
      %286 = vmatprep.subr.mxu0 0.0
      %287 = vmatpush1.msra.mxu0 0.0
      %288 = vmatprep.mubr.f32.mxu0 %v213
      %289 = vmatmul.mubr.f32.gmra.mrb[0].mxu0 %v197
      %v290 = vpop.f32.mrb[0].mxu0
      %v291 = vadd.f32 %v209, %v290
      %v292 = vpop.f32.mrb[0].mxu0
      %293 = vmatprep.mubr.f32.mxu0 %v216
      %294 = vmatmul.mubr.f32.gmra.mrb[0].mxu0 %v199
      %v295 = vpop.f32.mrb[0].mxu0
      %v296 = vadd.f32 %v209, %v295
      %v297 = vpop.f32.mrb[0].mxu0
      %298 = vmatprep.mubr.f32.mxu0 %v219
      %299 = vmatmul.mubr.f32.gmra.mrb[0].mxu0 %v201
      %v300 = vpop.f32.mrb[0].mxu0
      %v301 = vadd.f32 %v209, %v300
      %v302 = vpop.f32.mrb[0].mxu0
      %303 = vmatprep.mubr.f32.mxu0 %v222
      %304 = vmatmul.mubr.f32.gmra.mrb[0].mxu0 %v203
      %v305 = vpop.f32.mrb[0].mxu0
      %v306 = vadd.f32 %v209, %v305
      %v307 = vpop.f32.mrb[0].mxu0
      %308 = vdwg.mxu0
      %v309 = vmax.f32 %v291, 0.0
      %v310 = vmax.f32 %v296, 0.0
      %v311 = vmax.f32 %v301, 0.0
      %v312 = vmax.f32 %v306, 0.0
      %s313 = scalar_lea.vmem %s165, 64
      %v314 = vld [vmem:[%s313] sm:$0xff]
      %v315 = vld [vmem:[%s313 + $0x8] sm:$0xff]
      %v316 = vld [vmem:[%s313 + $0x10] sm:$0xff]
      %v317 = vld [vmem:[%s313 + $0x18] sm:$0xff]
      %v318 = vld [vmem:[%s313 + $0x20] sm:$0xff]
      %v319 = vld [vmem:[%s313 + $0x28] sm:$0xff]
      %v320 = vld [vmem:[%s313 + $0x30] sm:$0x1]
      %v321 = vld [vmem:[%s313 + $0x38] sm:$0x1]
      %v323 = vsel %vm211, %v315, 0
      %v326 = vsel %vm211, %v317, 0
      %v329 = vsel %vm211, %v319, 0
      %v332 = vsel %vm211, %v321, 0
      %334 = vmatprep.subr.mxu0 0.0
      %335 = vmatpush1.msra.mxu0 %v171
      %336 = vmatprep.subr.mxu0 0.0
      %337 = vmatpush1.msra.mxu0 %v172
      %338 = vmatprep.subr.mxu0 0.0
      %339 = vmatpush1.msra.mxu0 %v173
      %340 = vmatprep.subr.mxu0 0.0
      %341 = vmatpush1.msra.mxu0 %v174
      %342 = vmatprep.subr.mxu0 0.0
      %343 = vmatpush1.msra.mxu0 %v175
      %344 = vmatprep.subr.mxu0 0.0
      %345 = vmatpush1.msra.mxu0 %v176
      %346 = vmatprep.subr.mxu0 0.0
      %347 = vmatpush1.msra.mxu0 %v177
      %348 = vmatprep.subr.mxu0 0.0
      %349 = vmatpush1.msra.mxu0 %v178
      %350 = vmatprep.subr.mxu0 0.0
      %351 = vmatpush1.msra.mxu0 %v179
      %352 = vmatprep.subr.mxu0 0.0
      %353 = vmatpush1.msra.mxu0 %v180
      %354 = vmatprep.subr.mxu0 0.0
      %355 = vmatpush1.msra.mxu0 %v181
      %356 = vmatprep.subr.mxu0 0.0
      %357 = vmatpush1.msra.mxu0 %v182
      %358 = vmatprep.subr.mxu0 0.0
      %359 = vmatpush1.msra.mxu0 %v183
      %360 = vmatprep.subr.mxu0 0.0
      %361 = vmatpush1.msra.mxu0 %v184
      %362 = vmatprep.subr.mxu0 0.0
      %363 = vmatpush1.msra.mxu0 %v185
      %364 = vmatprep.subr.mxu0 0.0
      %365 = vmatpush1.msra.mxu0 %v186
      %366 = vmatprep.subr.mxu0 0.0
      %367 = vmatpush1.msra.mxu0 %v187
      %368 = vmatprep.subr.mxu0 0.0
      %369 = vmatpush1.msra.mxu0 %v188
      %370 = vmatprep.subr.mxu0 0.0
      %371 = vmatpush1.msra.mxu0 %v189
      %372 = vmatprep.subr.mxu0 0.0
      %373 = vmatpush1.msra.mxu0 %v190
      %374 = vmatprep.subr.mxu0 0.0
      %375 = vmatpush1.msra.mxu0 %v191
      %376 = vmatprep.subr.mxu0 0.0
      %377 = vmatpush1.msra.mxu0 %v192
      %378 = vmatprep.subr.mxu0 0.0
      %379 = vmatpush1.msra.mxu0 %v193
      %380 = vmatprep.subr.mxu0 0.0
      %381 = vmatpush1.msra.mxu0 %v194
      %382 = vmatprep.subr.mxu0 0.0
      %383 = vmatpush1.msra.mxu0 %v195
      %384 = vmatprep.subr.mxu0 0.0
      %385 = vmatpush1.msra.mxu0 0.0
      %386 = vmatprep.subr.mxu0 0.0
      %387 = vmatpush1.msra.mxu0 0.0
      %388 = vmatprep.subr.mxu0 0.0
      %389 = vmatpush1.msra.mxu0 0.0
      %390 = vmatprep.subr.mxu0 0.0
      %391 = vmatpush1.msra.mxu0 0.0
      %392 = vmatprep.subr.mxu0 0.0
      %393 = vmatpush1.msra.mxu0 0.0
      %394 = vmatprep.subr.mxu0 0.0
      %395 = vmatpush1.msra.mxu0 0.0
      %396 = vmatprep.subr.mxu0 0.0
      %397 = vmatpush1.msra.mxu0 0.0
      %398 = vmatprep.mubr.f32.mxu0 %v323
      %399 = vmatmul.mubr.f32.gmra.mrb[0].mxu0 %v314
      %v400 = vpop.f32.mrb[0].mxu0
      %v401 = vadd.f32 %v209, %v400
      %v402 = vpop.f32.mrb[0].mxu0
      %403 = vmatprep.mubr.f32.mxu0 %v326
      %404 = vmatmul.mubr.f32.gmra.mrb[0].mxu0 %v316
      %v405 = vpop.f32.mrb[0].mxu0
      %v406 = vadd.f32 %v209, %v405
      %v407 = vpop.f32.mrb[0].mxu0
      %408 = vmatprep.mubr.f32.mxu0 %v329
      %409 = vmatmul.mubr.f32.gmra.mrb[0].mxu0 %v318
      %v410 = vpop.f32.mrb[0].mxu0
      %v411 = vadd.f32 %v209, %v410
      %v412 = vpop.f32.mrb[0].mxu0
      %413 = vmatprep.mubr.f32.mxu0 %v332
      %414 = vmatmul.mubr.f32.gmra.mrb[0].mxu0 %v320
      %v415 = vpop.f32.mrb[0].mxu0
      %v416 = vadd.f32 %v209, %v415
      %v417 = vpop.f32.mrb[0].mxu0
      %418 = vdwg.mxu0
      %v419 = vmax.f32 %v401, 0.0
      %v420 = vmax.f32 %v406, 0.0
      %v421 = vmax.f32 %v411, 0.0
      %v422 = vmax.f32 %v416, 0.0
      %v423 = vmax.f32 %v309, %v419
      %v424 = vmax.f32 %v310, %v420
      %v425 = vmax.f32 %v311, %v421
      %v426 = vmax.f32 %v312, %v422
      %s427 = scalar_lea.vmem %s165, 128
      %v428 = vld [vmem:[%s427] sm:$0xff]
      %v429 = vld [vmem:[%s427 + $0x8] sm:$0xff]
      %v430 = vld [vmem:[%s427 + $0x10] sm:$0xff]
      %v431 = vld [vmem:[%s427 + $0x18] sm:$0xff]
      %v432 = vld [vmem:[%s427 + $0x20] sm:$0xff]
      %v433 = vld [vmem:[%s427 + $0x28] sm:$0xff]
      %v434 = vld [vmem:[%s427 + $0x30] sm:$0x1]
      %v435 = vld [vmem:[%s427 + $0x38] sm:$0x1]
      %v437 = vsel %vm211, %v429, 0
      %v440 = vsel %vm211, %v431, 0
      %v443 = vsel %vm211, %v433, 0
      %v446 = vsel %vm211, %v435, 0
      %448 = vmatprep.subr.mxu0 0.0
      %449 = vmatpush1.msra.mxu0 %v171
      %450 = vmatprep.subr.mxu0 0.0
      %451 = vmatpush1.msra.mxu0 %v172
      %452 = vmatprep.subr.mxu0 0.0
      %453 = vmatpush1.msra.mxu0 %v173
      %454 = vmatprep.subr.mxu0 0.0
      %455 = vmatpush1.msra.mxu0 %v174
      %456 = vmatprep.subr.mxu0 0.0
      %457 = vmatpush1.msra.mxu0 %v175
      %458 = vmatprep.subr.mxu0 0.0
      %459 = vmatpush1.msra.mxu0 %v176
      %460 = vmatprep.subr.mxu0 0.0
      %461 = vmatpush1.msra.mxu0 %v177
      %462 = vmatprep.subr.mxu0 0.0
      %463 = vmatpush1.msra.mxu0 %v178
      %464 = vmatprep.subr.mxu0 0.0
      %465 = vmatpush1.msra.mxu0 %v179
      %466 = vmatprep.subr.mxu0 0.0
      %467 = vmatpush1.msra.mxu0 %v180
      %468 = vmatprep.subr.mxu0 0.0
      %469 = vmatpush1.msra.mxu0 %v181
      %470 = vmatprep.subr.mxu0 0.0
      %471 = vmatpush1.msra.mxu0 %v182
      %472 = vmatprep.subr.mxu0 0.0
      %473 = vmatpush1.msra.mxu0 %v183
      %474 = vmatprep.subr.mxu0 0.0
      %475 = vmatpush1.msra.mxu0 %v184
      %476 = vmatprep.subr.mxu0 0.0
      %477 = vmatpush1.msra.mxu0 %v185
      %478 = vmatprep.subr.mxu0 0.0
      %479 = vmatpush1.msra.mxu0 %v186
      %480 = vmatprep.subr.mxu0 0.0
      %481 = vmatpush1.msra.mxu0 %v187
      %482 = vmatprep.subr.mxu0 0.0
      %483 = vmatpush1.msra.mxu0 %v188
      %484 = vmatprep.subr.mxu0 0.0
      %485 = vmatpush1.msra.mxu0 %v189
      %486 = vmatprep.subr.mxu0 0.0
      %487 = vmatpush1.msra.mxu0 %v190
      %488 = vmatprep.subr.mxu0 0.0
      %489 = vmatpush1.msra.mxu0 %v191
      %490 = vmatprep.subr.mxu0 0.0
      %491 = vmatpush1.msra.mxu0 %v192
      %492 = vmatprep.subr.mxu0 0.0
      %493 = vmatpush1.msra.mxu0 %v193
      %494 = vmatprep.subr.mxu0 0.0
      %495 = vmatpush1.msra.mxu0 %v194
      %496 = vmatprep.subr.mxu0 0.0
      %497 = vmatpush1.msra.mxu0 %v195
      %498 = vmatprep.subr.mxu0 0.0
      %499 = vmatpush1.msra.mxu0 0.0
      %500 = vmatprep.subr.mxu0 0.0
      %501 = vmatpush1.msra.mxu0 0.0
      %502 = vmatprep.subr.mxu0 0.0
      %503 = vmatpush1.msra.mxu0 0.0
      %504 = vmatprep.subr.mxu0 0.0
      %505 = vmatpush1.msra.mxu0 0.0
      %506 = vmatprep.subr.mxu0 0.0
      %507 = vmatpush1.msra.mxu0 0.0
      %508 = vmatprep.subr.mxu0 0.0
      %509 = vmatpush1.msra.mxu0 0.0
      %510 = vmatprep.subr.mxu0 0.0
      %511 = vmatpush1.msra.mxu0 0.0
      %512 = vmatprep.mubr.f32.mxu0 %v437
      %513 = vmatmul.mubr.f32.gmra.mrb[0].mxu0 %v428
      %v514 = vpop.f32.mrb[0].mxu0
      %v515 = vadd.f32 %v209, %v514
      %v516 = vpop.f32.mrb[0].mxu0
      %517 = vmatprep.mubr.f32.mxu0 %v440
      %518 = vmatmul.mubr.f32.gmra.mrb[0].mxu0 %v430
      %v519 = vpop.f32.mrb[0].mxu0
      %v520 = vadd.f32 %v209, %v519
      %v521 = vpop.f32.mrb[0].mxu0
      %522 = vmatprep.mubr.f32.mxu0 %v443
      %523 = vmatmul.mubr.f32.gmra.mrb[0].mxu0 %v432
      %v524 = vpop.f32.mrb[0].mxu0
      %v525 = vadd.f32 %v209, %v524
      %v526 = vpop.f32.mrb[0].mxu0
      %527 = vmatprep.mubr.f32.mxu0 %v446
      %528 = vmatmul.mubr.f32.gmra.mrb[0].mxu0 %v434
      %v529 = vpop.f32.mrb[0].mxu0
      %v530 = vadd.f32 %v209, %v529
      %v531 = vpop.f32.mrb[0].mxu0
      %532 = vdwg.mxu0
      %v533 = vmax.f32 %v515, 0.0
      %v534 = vmax.f32 %v520, 0.0
      %v535 = vmax.f32 %v525, 0.0
      %v536 = vmax.f32 %v530, 0.0
      %v537 = vmax.f32 %v423, %v533
      %v538 = vmax.f32 %v424, %v534
      %v539 = vmax.f32 %v425, %v535
      %v540 = vmax.f32 %v426, %v536
      %s541 = scalar_lea.vmem %s165, 192
      %v542 = vld [vmem:[%s541] sm:$0xff]
      %v543 = vld [vmem:[%s541 + $0x8] sm:$0xff]
      %v544 = vld [vmem:[%s541 + $0x10] sm:$0xff]
      %v545 = vld [vmem:[%s541 + $0x18] sm:$0xff]
      %v546 = vld [vmem:[%s541 + $0x20] sm:$0xff]
      %v547 = vld [vmem:[%s541 + $0x28] sm:$0xff]
      %v548 = vld [vmem:[%s541 + $0x30] sm:$0x1]
      %v549 = vld [vmem:[%s541 + $0x38] sm:$0x1]
      %v551 = vsel %vm211, %v543, 0
      %v554 = vsel %vm211, %v545, 0
      %v557 = vsel %vm211, %v547, 0
      %v560 = vsel %vm211, %v549, 0
      %562 = vmatprep.subr.mxu0 0.0
      %563 = vmatpush1.msra.mxu0 %v171
      %564 = vmatprep.subr.mxu0 0.0
      %565 = vmatpush1.msra.mxu0 %v172
      %566 = vmatprep.subr.mxu0 0.0
      %567 = vmatpush1.msra.mxu0 %v173
      %568 = vmatprep.subr.mxu0 0.0
      %569 = vmatpush1.msra.mxu0 %v174
      %570 = vmatprep.subr.mxu0 0.0
      %571 = vmatpush1.msra.mxu0 %v175
      %572 = vmatprep.subr.mxu0 0.0
      %573 = vmatpush1.msra.mxu0 %v176
      %574 = vmatprep.subr.mxu0 0.0
      %575 = vmatpush1.msra.mxu0 %v177
      %576 = vmatprep.subr.mxu0 0.0
      %577 = vmatpush1.msra.mxu0 %v178
      %578 = vmatprep.subr.mxu0 0.0
      %579 = vmatpush1.msra.mxu0 %v179
      %580 = vmatprep.subr.mxu0 0.0
      %581 = vmatpush1.msra.mxu0 %v180
      %582 = vmatprep.subr.mxu0 0.0
      %583 = vmatpush1.msra.mxu0 %v181
      %584 = vmatprep.subr.mxu0 0.0
      %585 = vmatpush1.msra.mxu0 %v182
      %586 = vmatprep.subr.mxu0 0.0
      %587 = vmatpush1.msra.mxu0 %v183
      %588 = vmatprep.subr.mxu0 0.0
      %589 = vmatpush1.msra.mxu0 %v184
      %590 = vmatprep.subr.mxu0 0.0
      %591 = vmatpush1.msra.mxu0 %v185
      %592 = vmatprep.subr.mxu0 0.0
      %593 = vmatpush1.msra.mxu0 %v186
      %594 = vmatprep.subr.mxu0 0.0
      %595 = vmatpush1.msra.mxu0 %v187
      %596 = vmatprep.subr.mxu0 0.0
      %597 = vmatpush1.msra.mxu0 %v188
      %598 = vmatprep.subr.mxu0 0.0
      %599 = vmatpush1.msra.mxu0 %v189
      %600 = vmatprep.subr.mxu0 0.0
      %601 = vmatpush1.msra.mxu0 %v190
      %602 = vmatprep.subr.mxu0 0.0
      %603 = vmatpush1.msra.mxu0 %v191
      %604 = vmatprep.subr.mxu0 0.0
      %605 = vmatpush1.msra.mxu0 %v192
      %606 = vmatprep.subr.mxu0 0.0
      %607 = vmatpush1.msra.mxu0 %v193
      %608 = vmatprep.subr.mxu0 0.0
      %609 = vmatpush1.msra.mxu0 %v194
      %610 = vmatprep.subr.mxu0 0.0
      %611 = vmatpush1.msra.mxu0 %v195
      %612 = vmatprep.subr.mxu0 0.0
      %613 = vmatpush1.msra.mxu0 0.0
      %614 = vmatprep.subr.mxu0 0.0
      %615 = vmatpush1.msra.mxu0 0.0
      %616 = vmatprep.subr.mxu0 0.0
      %617 = vmatpush1.msra.mxu0 0.0
      %618 = vmatprep.subr.mxu0 0.0
      %619 = vmatpush1.msra.mxu0 0.0
      %620 = vmatprep.subr.mxu0 0.0
      %621 = vmatpush1.msra.mxu0 0.0
      %622 = vmatprep.subr.mxu0 0.0
      %623 = vmatpush1.msra.mxu0 0.0
      %624 = vmatprep.subr.mxu0 0.0
      %625 = vmatpush1.msra.mxu0 0.0
      %626 = vmatprep.mubr.f32.mxu0 %v551
      %627 = vmatmul.mubr.f32.gmra.mrb[0].mxu0 %v542
      %v628 = vpop.f32.mrb[0].mxu0
      %v629 = vadd.f32 %v209, %v628
      %v630 = vpop.f32.mrb[0].mxu0
      %631 = vmatprep.mubr.f32.mxu0 %v554
      %632 = vmatmul.mubr.f32.gmra.mrb[0].mxu0 %v544
      %v633 = vpop.f32.mrb[0].mxu0
      %v634 = vadd.f32 %v209, %v633
      %v635 = vpop.f32.mrb[0].mxu0
      %636 = vmatprep.mubr.f32.mxu0 %v557
      %637 = vmatmul.mubr.f32.gmra.mrb[0].mxu0 %v546
      %v638 = vpop.f32.mrb[0].mxu0
      %v639 = vadd.f32 %v209, %v638
      %v640 = vpop.f32.mrb[0].mxu0
      %641 = vmatprep.mubr.f32.mxu0 %v560
      %642 = vmatmul.mubr.f32.gmra.mrb[0].mxu0 %v548
      %v643 = vpop.f32.mrb[0].mxu0
      %v644 = vadd.f32 %v209, %v643
      %v645 = vpop.f32.mrb[0].mxu0
      %646 = vdwg.mxu0
      %v647 = vmax.f32 %v629, 0.0
      %v648 = vmax.f32 %v634, 0.0
      %v649 = vmax.f32 %v639, 0.0
      %v650 = vmax.f32 %v644, 0.0
      %v651 = vmax.f32 %v537, %v647
      %v652 = vmax.f32 %v538, %v648
      %v653 = vmax.f32 %v539, %v649
      %v654 = vmax.f32 %v540, %v650
      %vm655 = vcmask 130048
      %656 = vst.msk [vmem:[%s170] sm:$0xff] %vm655, %v651
      %657 = vst.msk [vmem:[%s170 + $0x8] sm:$0xff] %vm655, %v652
      %658 = vst.msk [vmem:[%s170 + $0x10] sm:$0xff] %vm655, %v653
      %vm659 = vcmask 122880
      %660 = vst.msk [vmem:[%s170 + $0x18] sm:$0x1] %vm659, %v654
      %p661 = scmp.lt.s32.totalorder %s14, 1
      %s662 = scalar_select %p661, %s14, 1
      %s663 = smul.addr %s662, 4
      %s664 = smul.addr %s663, 8
      %s665 = scalar_lea.vmem %s3, %s664
      // Predicated region
      $region33: #{lenet100_forward.4} parent=31 // pred_check
        %p666 = pneg %p100
      $region34: #{lenet100_forward.4} parent=31 // pred_check_branch
        %668 = sbr.rel (%p666) target = $region36
      $region35: #{lenet100_forward.4} parent=31 // pred_region
        _
      $region36: #{lenet100_forward.4} parent=31 // pred_fallthru
        _
    $region32: #{lenet100_forward.4} parent=5 // pred_fallthru
      _
    %p669 = scmp.le.s32.totalorder 2, %s9
    // Predicated region
    $region37: #{lenet100_forward.4} parent=5 // pred_check
      %p670 = pneg %p669
    $region38: #{lenet100_forward.4} parent=5 // pred_check_branch
      %672 = sbr.rel (%p670) target = $region40
    $region39: #{lenet100_forward.4} parent=5 // pred_region
      %s673 = ssub.s32 %s9, 2
      // Predicated region
      $region41: #{lenet100_forward.4} parent=39 // pred_check
        %p674 = pneg %p106
      $region42: #{lenet100_forward.4} parent=39 // pred_check_branch
        %676 = sbr.rel (%p674) target = $region44
      $region43: #{lenet100_forward.4} parent=39 // pred_region
        %p677 = scmp.lt.s32.totalorder %s15, 1
        %s678 = scalar_select %p677, %s15, 1
        %s679 = smul.addr %s678, 4
        %s680 = smul.addr %s679, 8
        %s681 = scalar_lea.vmem %s3, %s680
      $region44: #{lenet100_forward.4} parent=39 // pred_fallthru
        _
    $region40: #{lenet100_forward.4} parent=5 // pred_fallthru
      _
  $region6: #{lenet100_forward.4} parent=0 // loop_footer
    %s13 = sadd.s32 1, %s9
  $region7: #{lenet100_forward.4} parent=0 // loop_footer_branch
    %8 = sbr.rel target = $region3
  $region8: #{lenet100_forward.4} parent=0 // loop_exit
    _

// kernel: lenet100_forward.5
$region0: #{lenet100_forward.5}
  #allocation0 [shape = 'u32[]', space=smem, size = 0x4, offset = 0x4, fixed_abs, tag = 'smem constant byte address 0x4 - core index']
  #allocation1 [shape = 'u32[144,128]{1,0:T(1,128)}', space=vmem, size = 0x12000, scoped, tag = 'internal scratch']
  %s0 = inlined_call_operand.vmem [shape: f32[2,400], index: 0, kind: input, shape index: {}]
  %s1 = inlined_call_operand.vmem [shape: f32[400,128], index: 1, kind: input, shape index: {}]
  %s2 = inlined_call_operand.vmem [shape: f32[1,128], index: 2, kind: input, shape index: {}]
  %s3 = inlined_call_operand.vmem [shape: f32[128,128], index: 3, kind: input, shape index: {}]
  %s4 = inlined_call_operand.vmem [shape: f32[1,128], index: 4, kind: input, shape index: {}]
  %s5 = inlined_call_operand.vmem [shape: f32[128,128], index: 5, kind: input, shape index: {}]
  %s6 = inlined_call_operand.vmem [shape: f32[1,128], index: 6, kind: input, shape index: {}]
  %s7 = inlined_call_operand.hbm [shape: f32[2,128], index: 7, kind: output, shape index: {}]
  %s8 = sld [smem:[#allocation0]]
  $region38: #{lenet100_forward.5} parent=0
    _
  %s10 = ssub.s32 1, %s8
  %s11 = scalar_select 0, %s10, %s8
  $region1: #{lenet100_forward.5} parent=0
    #allocation2 [shape = 'u8[1024]{0}', space=vmem, size = 0x400, scoped, tag = 'output window, operand 0, single buffered']
    #allocation3 [shape = 's32[1]{0}', space=sflag, size = 0x4, scoped, tag = 'scoped memory for lenet100_forward.5']
    %12 = vsyncpa [#allocation3], 0
    // Predicated region
    $region2: #{lenet100_forward.5} parent=1 // pred_check
      _
    $region3: #{lenet100_forward.5} parent=1 // pred_check_branch
      %14 = sbr.rel (0) target = $region5
    $region4: #{lenet100_forward.5} parent=1 // pred_region
      _
    $region5: #{lenet100_forward.5} parent=1 // pred_fallthru
      _
    // Predicated region
    $region6: #{lenet100_forward.5} parent=1 // pred_check
      _
    $region7: #{lenet100_forward.5} parent=1 // pred_check_branch
      %16 = sbr.rel (0) target = $region9
    $region8: #{lenet100_forward.5} parent=1 // pred_region
      _
    $region9: #{lenet100_forward.5} parent=1 // pred_fallthru
      _
    // Predicated region
    $region10: #{lenet100_forward.5} parent=1 // pred_check
      _
    $region11: #{lenet100_forward.5} parent=1 // pred_check_branch
      %18 = sbr.rel (0) target = $region13
    $region12: #{lenet100_forward.5} parent=1 // pred_region
      _
    $region13: #{lenet100_forward.5} parent=1 // pred_fallthru
      _
    // Predicated region
    $region14: #{lenet100_forward.5} parent=1 // pred_check
      _
    $region15: #{lenet100_forward.5} parent=1 // pred_check_branch
      %20 = sbr.rel (0) target = $region17
    $region16: #{lenet100_forward.5} parent=1 // pred_region
      _
    $region17: #{lenet100_forward.5} parent=1 // pred_fallthru
      _
    // Predicated region
    $region18: #{lenet100_forward.5} parent=1 // pred_check
      _
    $region19: #{lenet100_forward.5} parent=1 // pred_check_branch
      %22 = sbr.rel (0) target = $region21
    $region20: #{lenet100_forward.5} parent=1 // pred_region
      _
    $region21: #{lenet100_forward.5} parent=1 // pred_fallthru
      _
    // Predicated region
    $region22: #{lenet100_forward.5} parent=1 // pred_check
      _
    $region23: #{lenet100_forward.5} parent=1 // pred_check_branch
      %24 = sbr.rel (0) target = $region25
    $region24: #{lenet100_forward.5} parent=1 // pred_region
      _
    $region25: #{lenet100_forward.5} parent=1 // pred_fallthru
      _
    // Predicated region
    $region26: #{lenet100_forward.5} parent=1 // pred_check
      _
    $region27: #{lenet100_forward.5} parent=1 // pred_check_branch
      %26 = sbr.rel (0) target = $region29
    $region28: #{lenet100_forward.5} parent=1 // pred_region
      _
    $region29: #{lenet100_forward.5} parent=1 // pred_fallthru
      _
    %v27 = vld [vmem:[%s0] sm:$0xff]
    %v28 = vld [vmem:[%s1] sm:$0xff]
    %v29 = vld [vmem:[%s1 + $0x8] sm:$0xff]
    %v30 = vld [vmem:[%s1 + $0x10] sm:$0xff]
    %v31 = vld [vmem:[%s1 + $0x18] sm:$0xff]
    %v32 = vld [vmem:[%s1 + $0x20] sm:$0xff]
    %v33 = vld [vmem:[%s1 + $0x28] sm:$0xff]
    %v34 = vld [vmem:[%s1 + $0x30] sm:$0xff]
    %v35 = vld [vmem:[%s1 + $0x38] sm:$0xff]
    %v36 = vld [vmem:[%s1 + $0x40] sm:$0xff]
    %v37 = vld [vmem:[%s1 + $0x48] sm:$0xff]
    %v38 = vld [vmem:[%s1 + $0x50] sm:$0xff]
    %v39 = vld [vmem:[%s1 + $0x58] sm:$0xff]
    %v40 = vld [vmem:[%s1 + $0x60] sm:$0xff]
    %v41 = vld [vmem:[%s1 + $0x68] sm:$0xff]
    %v42 = vld [vmem:[%s1 + $0x70] sm:$0xff]
    %v43 = vld [vmem:[%s1 + $0x78] sm:$0xff]
    %v44 = vld [vmem:[%s1 + $0x80] sm:$0xff]
    %v45 = vld [vmem:[%s1 + $0x88] sm:$0xff]
    %v46 = vld [vmem:[%s1 + $0x90] sm:$0xff]
    %v47 = vld [vmem:[%s1 + $0x98] sm:$0xff]
    %v48 = vld [vmem:[%s1 + $0xa0] sm:$0xff]
    %v49 = vld [vmem:[%s1 + $0xa8] sm:$0xff]
    %v50 = vld [vmem:[%s1 + $0xb0] sm:$0xff]
    %v51 = vld [vmem:[%s1 + $0xb8] sm:$0xff]
    %v52 = vld [vmem:[%s1 + $0xc0] sm:$0xff]
    %v53 = vld [vmem:[%s1 + $0xc8] sm:$0xff]
    %v54 = vld [vmem:[%s1 + $0xd0] sm:$0xff]
    %v55 = vld [vmem:[%s1 + $0xd8] sm:$0xff]
    %v56 = vld [vmem:[%s1 + $0xe0] sm:$0xff]
    %v57 = vld [vmem:[%s1 + $0xe8] sm:$0xff]
    %v58 = vld [vmem:[%s1 + $0xf0] sm:$0xff]
    %v59 = vld [vmem:[%s1 + $0xf8] sm:$0xff]
    %v60 = vld [vmem:[%s1 + $0x100] sm:$0xff]
    %v61 = vld [vmem:[%s1 + $0x108] sm:$0xff]
    %v62 = vld [vmem:[%s1 + $0x110] sm:$0xff]
    %v63 = vld [vmem:[%s1 + $0x118] sm:$0xff]
    %v64 = vld [vmem:[%s1 + $0x120] sm:$0xff]
    %v65 = vld [vmem:[%s1 + $0x128] sm:$0xff]
    %v66 = vld [vmem:[%s1 + $0x130] sm:$0xff]
    %v67 = vld [vmem:[%s1 + $0x138] sm:$0xff]
    %v68 = vld [vmem:[%s1 + $0x140] sm:$0xff]
    %v69 = vld [vmem:[%s1 + $0x148] sm:$0xff]
    %v70 = vld [vmem:[%s1 + $0x150] sm:$0xff]
    %v71 = vld [vmem:[%s1 + $0x158] sm:$0xff]
    %v72 = vld [vmem:[%s1 + $0x160] sm:$0xff]
    %v73 = vld [vmem:[%s1 + $0x168] sm:$0xff]
    %v74 = vld [vmem:[%s1 + $0x170] sm:$0xff]
    %v75 = vld [vmem:[%s1 + $0x178] sm:$0xff]
    %v76 = vld [vmem:[%s1 + $0x180] sm:$0xff]
    %v77 = vld [vmem:[%s1 + $0x188] sm:$0xff]
    %v78 = vld [vmem:[%s2] sm:$0x1]
    %v80 = vlaneseq
    %v81 = vshrl.u32 %v80, 7
    %v82 = vsub.s32 0, %v81
    %v83 = vrot.slane %v78, %v82
    %v86 = vcombine.high %v27, %v27
    %v88 = vunpack.c.l.s4 1983009808
    %v89 = vunpack.c.0.s8 %v88
    %v90 = vlaneseq
    %v91 = vshrl.u32 %v90, 7
    %v92 = vsub.s32 %v89, %v91
    %v93 = vrot.slane %v27, %v92
    %v95 = vunpack.c.l.s4 1983009808
    %v96 = vunpack.c.0.s8 %v95
    %v97 = vlaneseq
    %v98 = vshrl.u32 %v97, 7
    %v99 = vsub.s32 %v96, %v98
    %v100 = vrot.slane %v86, %v99
    %v101 = vcombine.high %v93, %v93
    %v102 = vcombine.high %v100, %v100
    %vm106 = vcmask 130048
    %v107 = vsel %vm106, %v102, 0
    %109 = vmatprep.subr.mxu0 0.0
    %110 = vmatpush1.msra.mxu0 %v28
    %111 = vmatprep.subr.mxu0 0.0
    %112 = vmatpush1.msra.mxu0 %v29
    %113 = vmatprep.subr.mxu0 0.0
    %114 = vmatpush1.msra.mxu0 %v30
    %115 = vmatprep.subr.mxu0 0.0
    %116 = vmatpush1.msra.mxu0 %v31
    %117 = vmatprep.subr.mxu0 0.0
    %118 = vmatpush1.msra.mxu0 %v32
    %119 = vmatprep.subr.mxu0 0.0
    %120 = vmatpush1.msra.mxu0 %v33
    %121 = vmatprep.subr.mxu0 0.0
    %122 = vmatpush1.msra.mxu0 %v34
    %123 = vmatprep.subr.mxu0 0.0
    %124 = vmatpush1.msra.mxu0 %v35
    %125 = vmatprep.subr.mxu0 0.0
    %126 = vmatpush1.msra.mxu0 %v36
    %127 = vmatprep.subr.mxu0 0.0
    %128 = vmatpush1.msra.mxu0 %v37
    %129 = vmatprep.subr.mxu0 0.0
    %130 = vmatpush1.msra.mxu0 %v38
    %131 = vmatprep.subr.mxu0 0.0
    %132 = vmatpush1.msra.mxu0 %v39
    %133 = vmatprep.subr.mxu0 0.0
    %134 = vmatpush1.msra.mxu0 %v40
    %135 = vmatprep.subr.mxu0 0.0
    %136 = vmatpush1.msra.mxu0 %v41
    %137 = vmatprep.subr.mxu0 0.0
    %138 = vmatpush1.msra.mxu0 %v42
    %139 = vmatprep.subr.mxu0 0.0
    %140 = vmatpush1.msra.mxu0 %v43
    %141 = vmatprep.subr.mxu0 0.0
    %142 = vmatpush1.msra.mxu0 %v44
    %143 = vmatprep.subr.mxu0 0.0
    %144 = vmatpush1.msra.mxu0 %v45
    %145 = vmatprep.subr.mxu0 0.0
    %146 = vmatpush1.msra.mxu0 %v46
    %147 = vmatprep.subr.mxu0 0.0
    %148 = vmatpush1.msra.mxu0 %v47
    %149 = vmatprep.subr.mxu0 0.0
    %150 = vmatpush1.msra.mxu0 %v48
    %151 = vmatprep.subr.mxu0 0.0
    %152 = vmatpush1.msra.mxu0 %v49
    %153 = vmatprep.subr.mxu0 0.0
    %154 = vmatpush1.msra.mxu0 %v50
    %155 = vmatprep.subr.mxu0 0.0
    %156 = vmatpush1.msra.mxu0 %v51
    %157 = vmatprep.subr.mxu0 0.0
    %158 = vmatpush1.msra.mxu0 %v52
    %159 = vmatprep.subr.mxu0 0.0
    %160 = vmatpush1.msra.mxu0 %v53
    %161 = vmatprep.subr.mxu0 0.0
    %162 = vmatpush1.msra.mxu0 %v54
    %163 = vmatprep.subr.mxu0 0.0
    %164 = vmatpush1.msra.mxu0 %v55
    %165 = vmatprep.subr.mxu0 0.0
    %166 = vmatpush1.msra.mxu0 %v56
    %167 = vmatprep.subr.mxu0 0.0
    %168 = vmatpush1.msra.mxu0 %v57
    %169 = vmatprep.subr.mxu0 0.0
    %170 = vmatpush1.msra.mxu0 %v58
    %171 = vmatprep.subr.mxu0 0.0
    %172 = vmatpush1.msra.mxu0 %v59
    %173 = vmatprep.mubr.f32.mxu0 %v101
    %174 = vmatmul.mubr.f32.gmra.mrb[0].mxu0 %v93
    %v175 = vpop.f32.mrb[0].mxu0
    %v176 = vadd.f32 %v83, %v175
    %v177 = vpop.f32.mrb[0].mxu0
    %178 = vdwg.mxu0
    %179 = vmatprep.subr.mxu0 0.0
    %180 = vmatpush1.msra.mxu0 %v60
    %181 = vmatprep.subr.mxu0 0.0
    %182 = vmatpush1.msra.mxu0 %v61
    %183 = vmatprep.subr.mxu0 0.0
    %184 = vmatpush1.msra.mxu0 %v62
    %185 = vmatprep.subr.mxu0 0.0
    %186 = vmatpush1.msra.mxu0 %v63
    %187 = vmatprep.subr.mxu0 0.0
    %188 = vmatpush1.msra.mxu0 %v64
    %189 = vmatprep.subr.mxu0 0.0
    %190 = vmatpush1.msra.mxu0 %v65
    %191 = vmatprep.subr.mxu0 0.0
    %192 = vmatpush1.msra.mxu0 %v66
    %193 = vmatprep.subr.mxu0 0.0
    %194 = vmatpush1.msra.mxu0 %v67
    %195 = vmatprep.subr.mxu0 0.0
    %196 = vmatpush1.msra.mxu0 %v68
    %197 = vmatprep.subr.mxu0 0.0
    %198 = vmatpush1.msra.mxu0 %v69
    %199 = vmatprep.subr.mxu0 0.0
    %200 = vmatpush1.msra.mxu0 %v70
    %201 = vmatprep.subr.mxu0 0.0
    %202 = vmatpush1.msra.mxu0 %v71
    %203 = vmatprep.subr.mxu0 0.0
    %204 = vmatpush1.msra.mxu0 %v72
    %205 = vmatprep.subr.mxu0 0.0
    %206 = vmatpush1.msra.mxu0 %v73
    %207 = vmatprep.subr.mxu0 0.0
    %208 = vmatpush1.msra.mxu0 %v74
    %209 = vmatprep.subr.mxu0 0.0
    %210 = vmatpush1.msra.mxu0 %v75
    %211 = vmatprep.subr.mxu0 0.0
    %212 = vmatpush1.msra.mxu0 %v76
    %213 = vmatprep.subr.mxu0 0.0
    %214 = vmatpush1.msra.mxu0 %v77
    %215 = vmatprep.subr.mxu0 0.0
    %216 = vmatpush1.msra.mxu0 0.0
    %217 = vmatprep.subr.mxu0 0.0
    %218 = vmatpush1.msra.mxu0 0.0
    %219 = vmatprep.subr.mxu0 0.0
    %220 = vmatpush1.msra.mxu0 0.0
    %221 = vmatprep.subr.mxu0 0.0
    %222 = vmatpush1.msra.mxu0 0.0
    %223 = vmatprep.subr.mxu0 0.0
    %224 = vmatpush1.msra.mxu0 0.0
    %225 = vmatprep.subr.mxu0 0.0
    %226 = vmatpush1.msra.mxu0 0.0
    %227 = vmatprep.subr.mxu0 0.0
    %228 = vmatpush1.msra.mxu0 0.0
    %229 = vmatprep.subr.mxu0 0.0
    %230 = vmatpush1.msra.mxu0 0.0
    %231 = vmatprep.subr.mxu0 0.0
    %232 = vmatpush1.msra.mxu0 0.0
    %233 = vmatprep.subr.mxu0 0.0
    %234 = vmatpush1.msra.mxu0 0.0
    %235 = vmatprep.subr.mxu0 0.0
    %236 = vmatpush1.msra.mxu0 0.0
    %237 = vmatprep.subr.mxu0 0.0
    %238 = vmatpush1.msra.mxu0 0.0
    %239 = vmatprep.subr.mxu0 0.0
    %240 = vmatpush1.msra.mxu0 0.0
    %241 = vmatprep.subr.mxu0 0.0
    %242 = vmatpush1.msra.mxu0 0.0
    %243 = vmatprep.mubr.f32.mxu0 %v107
    %244 = vmatmul.mubr.f32.gmra.mrb[0].mxu0 %v100
    %v245 = vpop.f32.mrb[0].mxu0
    %v246 = vadd.f32 %v176, %v245
    %v247 = vpop.f32.mrb[0].mxu0
    %248 = vdwg.mxu0
    %v249 = vmax.f32 %v246, 0.0
    %v250 = vld [vmem:[%s3] sm:$0xff]
    %v251 = vld [vmem:[%s3 + $0x8] sm:$0xff]
    %v252 = vld [vmem:[%s3 + $0x10] sm:$0xff]
    %v253 = vld [vmem:[%s3 + $0x18] sm:$0xff]
    %v254 = vld [vmem:[%s3 + $0x20] sm:$0xff]
    %v255 = vld [vmem:[%s3 + $0x28] sm:$0xff]
    %v256 = vld [vmem:[%s3 + $0x30] sm:$0xff]
    %v257 = vld [vmem:[%s3 + $0x38] sm:$0xff]
    %v258 = vld [vmem:[%s3 + $0x40] sm:$0xff]
    %v259 = vld [vmem:[%s3 + $0x48] sm:$0xff]
    %v260 = vld [vmem:[%s3 + $0x50] sm:$0xff]
    %v261 = vld [vmem:[%s3 + $0x58] sm:$0xff]
    %v262 = vld [vmem:[%s3 + $0x60] sm:$0xff]
    %v263 = vld [vmem:[%s3 + $0x68] sm:$0xff]
    %v264 = vld [vmem:[%s3 + $0x70] sm:$0xff]
    %v265 = vld [vmem:[%s3 + $0x78] sm:$0xff]
    %v266 = vld [vmem:[%s4] sm:$0x1]
    %v268 = vlaneseq
    %v269 = vshrl.u32 %v268, 7
    %v270 = vsub.s32 0, %v269
    %v271 = vrot.slane %v266, %v270
    %273 = vmatprep.subr.mxu0 0.0
    %274 = vmatpush1.msra.mxu0 %v250
    %275 = vmatprep.subr.mxu0 0.0
    %276 = vmatpush1.msra.mxu0 %v251
    %277 = vmatprep.subr.mxu0 0.0
    %278 = vmatpush1.msra.mxu0 %v252
    %279 = vmatprep.subr.mxu0 0.0
    %280 = vmatpush1.msra.mxu0 %v253
    %281 = vmatprep.subr.mxu0 0.0
    %282 = vmatpush1.msra.mxu0 %v254
    %283 = vmatprep.subr.mxu0 0.0
    %284 = vmatpush1.msra.mxu0 %v255
    %285 = vmatprep.subr.mxu0 0.0
    %286 = vmatpush1.msra.mxu0 %v256
    %287 = vmatprep.subr.mxu0 0.0
    %288 = vmatpush1.msra.mxu0 %v257
    %289 = vmatprep.subr.mxu0 0.0
    %290 = vmatpush1.msra.mxu0 %v258
    %291 = vmatprep.subr.mxu0 0.0
    %292 = vmatpush1.msra.mxu0 %v259
    %293 = vmatprep.subr.mxu0 0.0
    %294 = vmatpush1.msra.mxu0 %v260
    %295 = vmatprep.subr.mxu0 0.0
    %296 = vmatpush1.msra.mxu0 %v261
    %297 = vmatprep.subr.mxu0 0.0
    %298 = vmatpush1.msra.mxu0 %v262
    %299 = vmatprep.subr.mxu0 0.0
    %300 = vmatpush1.msra.mxu0 %v263
    %301 = vmatprep.subr.mxu0 0.0
    %302 = vmatpush1.msra.mxu0 %v264
    %303 = vmatprep.subr.mxu0 0.0
    %304 = vmatpush1.msra.mxu0 %v265
    %305 = vmatprep.subr.mxu0 0.0
    %306 = vmatpush1.msra.mxu0 0.0
    %307 = vmatprep.subr.mxu0 0.0
    %308 = vmatpush1.msra.mxu0 0.0
    %309 = vmatprep.subr.mxu0 0.0
    %310 = vmatpush1.msra.mxu0 0.0
    %311 = vmatprep.subr.mxu0 0.0
    %312 = vmatpush1.msra.mxu0 0.0
    %313 = vmatprep.subr.mxu0 0.0
    %314 = vmatpush1.msra.mxu0 0.0
    %315 = vmatprep.subr.mxu0 0.0
    %316 = vmatpush1.msra.mxu0 0.0
    %317 = vmatprep.subr.mxu0 0.0
    %318 = vmatpush1.msra.mxu0 0.0
    %319 = vmatprep.subr.mxu0 0.0
    %320 = vmatpush1.msra.mxu0 0.0
    %321 = vmatprep.subr.mxu0 0.0
    %322 = vmatpush1.msra.mxu0 0.0
    %323 = vmatprep.subr.mxu0 0.0
    %324 = vmatpush1.msra.mxu0 0.0
    %325 = vmatprep.subr.mxu0 0.0
    %326 = vmatpush1.msra.mxu0 0.0
    %327 = vmatprep.subr.mxu0 0.0
    %328 = vmatpush1.msra.mxu0 0.0
    %329 = vmatprep.subr.mxu0 0.0
    %330 = vmatpush1.msra.mxu0 0.0
    %331 = vmatprep.subr.mxu0 0.0
    %332 = vmatpush1.msra.mxu0 0.0
    %333 = vmatprep.subr.mxu0 0.0
    %334 = vmatpush1.msra.mxu0 0.0
    %335 = vmatprep.subr.mxu0 0.0
    %336 = vmatpush1.msra.mxu0 0.0
    %337 = vmatprep.mubr.f32.mxu0 0.0
    %338 = vmatmul.mubr.f32.gmra.mrb[0].mxu0 %v249
    %v339 = vpop.f32.mrb[0].mxu0
    %v340 = vadd.f32 %v271, %v339
    %v341 = vpop.f32.mrb[0].mxu0
    %342 = vdwg.mxu0
    %v343 = vmax.f32 %v340, 0.0
    %v344 = vld [vmem:[%s5] sm:$0xff]
    %v345 = vld [vmem:[%s5 + $0x8] sm:$0xff]
    %v346 = vld [vmem:[%s5 + $0x10] sm:$0xff]
    %v347 = vld [vmem:[%s5 + $0x18] sm:$0xff]
    %v348 = vld [vmem:[%s5 + $0x20] sm:$0xff]
    %v349 = vld [vmem:[%s5 + $0x28] sm:$0xff]
    %v350 = vld [vmem:[%s5 + $0x30] sm:$0xff]
    %v351 = vld [vmem:[%s5 + $0x38] sm:$0xff]
    %v352 = vld [vmem:[%s5 + $0x40] sm:$0xff]
    %v353 = vld [vmem:[%s5 + $0x48] sm:$0xff]
    %v354 = vld [vmem:[%s5 + $0x50] sm:$0xff]
    %v355 = vld [vmem:[%s5 + $0x58] sm:$0xff]
    %v356 = vld [vmem:[%s5 + $0x60] sm:$0xff]
    %v357 = vld [vmem:[%s5 + $0x68] sm:$0xff]
    %v358 = vld [vmem:[%s5 + $0x70] sm:$0xff]
    %v359 = vld [vmem:[%s5 + $0x78] sm:$0xff]
    %v360 = vld [vmem:[%s6] sm:$0x1]
    %v362 = vlaneseq
    %v363 = vshrl.u32 %v362, 7
    %v364 = vsub.s32 0, %v363
    %v365 = vrot.slane %v360, %v364
    %367 = vmatprep.subr.mxu0 0.0
    %368 = vmatpush1.msra.mxu0 %v344
    %369 = vmatprep.subr.mxu0 0.0
    %370 = vmatpush1.msra.mxu0 %v345
    %371 = vmatprep.subr.mxu0 0.0
    %372 = vmatpush1.msra.mxu0 %v346
    %373 = vmatprep.subr.mxu0 0.0
    %374 = vmatpush1.msra.mxu0 %v347
    %375 = vmatprep.subr.mxu0 0.0
    %376 = vmatpush1.msra.mxu0 %v348
    %377 = vmatprep.subr.mxu0 0.0
    %378 = vmatpush1.msra.mxu0 %v349
    %379 = vmatprep.subr.mxu0 0.0
    %380 = vmatpush1.msra.mxu0 %v350
    %381 = vmatprep.subr.mxu0 0.0
    %382 = vmatpush1.msra.mxu0 %v351
    %383 = vmatprep.subr.mxu0 0.0
    %384 = vmatpush1.msra.mxu0 %v352
    %385 = vmatprep.subr.mxu0 0.0
    %386 = vmatpush1.msra.mxu0 %v353
    %387 = vmatprep.subr.mxu0 0.0
    %388 = vmatpush1.msra.mxu0 %v354
    %389 = vmatprep.subr.mxu0 0.0
    %390 = vmatpush1.msra.mxu0 %v355
    %391 = vmatprep.subr.mxu0 0.0
    %392 = vmatpush1.msra.mxu0 %v356
    %393 = vmatprep.subr.mxu0 0.0
    %394 = vmatpush1.msra.mxu0 %v357
    %395 = vmatprep.subr.mxu0 0.0
    %396 = vmatpush1.msra.mxu0 %v358
    %397 = vmatprep.subr.mxu0 0.0
    %398 = vmatpush1.msra.mxu0 %v359
    %399 = vmatprep.subr.mxu0 0.0
    %400 = vmatpush1.msra.mxu0 0.0
    %401 = vmatprep.subr.mxu0 0.0
    %402 = vmatpush1.msra.mxu0 0.0
    %403 = vmatprep.subr.mxu0 0.0
    %404 = vmatpush1.msra.mxu0 0.0
    %405 = vmatprep.subr.mxu0 0.0
    %406 = vmatpush1.msra.mxu0 0.0
    %407 = vmatprep.subr.mxu0 0.0
    %408 = vmatpush1.msra.mxu0 0.0
    %409 = vmatprep.subr.mxu0 0.0
    %410 = vmatpush1.msra.mxu0 0.0
    %411 = vmatprep.subr.mxu0 0.0
    %412 = vmatpush1.msra.mxu0 0.0
    %413 = vmatprep.subr.mxu0 0.0
    %414 = vmatpush1.msra.mxu0 0.0
    %415 = vmatprep.subr.mxu0 0.0
    %416 = vmatpush1.msra.mxu0 0.0
    %417 = vmatprep.subr.mxu0 0.0
    %418 = vmatpush1.msra.mxu0 0.0
    %419 = vmatprep.subr.mxu0 0.0
    %420 = vmatpush1.msra.mxu0 0.0
    %421 = vmatprep.subr.mxu0 0.0
    %422 = vmatpush1.msra.mxu0 0.0
    %423 = vmatprep.subr.mxu0 0.0
    %424 = vmatpush1.msra.mxu0 0.0
    %425 = vmatprep.subr.mxu0 0.0
    %426 = vmatpush1.msra.mxu0 0.0
    %427 = vmatprep.subr.mxu0 0.0
    %428 = vmatpush1.msra.mxu0 0.0
    %429 = vmatprep.subr.mxu0 0.0
    %430 = vmatpush1.msra.mxu0 0.0
    %431 = vmatprep.mubr.f32.mxu0 0.0
    %432 = vmatmul.mubr.f32.gmra.mrb[0].mxu0 %v343
    %v433 = vpop.f32.mrb[0].mxu0
    %v434 = vadd.f32 %v365, %v433
    %v435 = vpop.f32.mrb[0].mxu0
    %436 = vdwg.mxu0
    %vm437 = vcmask 1041408
    %v438 = vsel %vm437, %v434, -inf
    %439 = vmax.xlane.f32.xlu0 %v438
    %v440 = vpop.xlane.xlu0 %439
    %v441 = vsub.f32 %v434, %v440
    %v442 = vmul.f32 %v441, 1.442695
    %v443 = vpow.pop %v442
    %v444 = vsel %vm437, %v443, 0.0
    %445 = vadd.xlane.f32.xlu0 %v444
    %v446 = vpop.xlane.xlu0 %445
    %v447 = vrcp.pop %v446
    %v448 = vmul.f32 %v443, %v447
    %449 = vst [vmem:[#allocation2] sm:$0x3] %v448
    // Predicated region
    $region30: #{lenet100_forward.5} parent=1 // pred_check
      _
    $region31: #{lenet100_forward.5} parent=1 // pred_check_branch
      %451 = sbr.rel (0) target = $region33
    $region32: #{lenet100_forward.5} parent=1 // pred_region
      %s453 = ssub.s32 32, 32
      %454 = vsyncadd [#allocation3], %s453
      %s456 = sshll.u32 [#allocation2], 4
      %s457 = int_to_ptr.vmem [resolvable:$true] %s456
      %459 = dma.vmem_to_hbm [thread:$0]  %s457, 32, %s7, [#allocation3]
    $region33: #{lenet100_forward.5} parent=1 // pred_fallthru
      _
    // Predicated region
    $region34: #{lenet100_forward.5} parent=1 // pred_check
      _
    $region35: #{lenet100_forward.5} parent=1 // pred_check_branch
      %461 = sbr.rel (0) target = $region37
    $region36: #{lenet100_forward.5} parent=1 // pred_region
      %462 = dma.done [#allocation3], 32
    $region37: #{lenet100_forward.5} parent=1 // pred_fallthru
      _
    %463 = vsyncpa [#allocation3], 1

</llo_original>
